<compile_context>
chip_gen: v7x
topology: tpu7x:2x2x1
jax: 0.10.0
libtpu: 0.0.40
codegen_flags: <defaults>
</compile_context>

<pallas_src>
import jax
import jax.numpy as jnp
from jax import lax
from jax.experimental import pallas as pl
from jax.experimental.pallas import tpu as pltpu

_K_CHUNK = 512  # codebook lanes processed per running-argmax step


def _vq_kernel(x_ref, wt_ref, c2h_ref, idx_ref):
    x = x_ref[...]                      # (TB, D) f32, streamed batch tile
    TB = x.shape[0]
    K = wt_ref.shape[1]
    kc = min(K, _K_CHUNK)

    best_score = jnp.full((TB, 1), -jnp.inf, dtype=jnp.float32)
    best_idx = jnp.zeros((TB, 1), dtype=jnp.int32)

    # Streaming running-argmax over the codebook: one MXU matmul + one VPU
    # subtract + a lane reduction per <=512-wide chunk.  Ref slices are static
    # and 128-lane aligned (except possibly a tail chunk), so they are views.
    for s in range(0, K, kc):
        e = min(s + kc, K)
        kw = e - s
        # score_k = x . w_k - 0.5*||w_k||^2 ;  argmax(score) == argmin(L2 dist)
        score = (jnp.dot(x, wt_ref[:, s:e], preferred_element_type=jnp.float32)
                 - c2h_ref[:, s:e])                                    # (TB, kw)
        chunk_max = jnp.max(score, axis=-1, keepdims=True)             # (TB, 1)
        iota = lax.broadcasted_iota(jnp.int32, (TB, kw), 1)
        # First occurrence within the chunk == torch.argmin tie-breaking.
        chunk_idx = jnp.min(jnp.where(score == chunk_max, iota, kw),
                            axis=-1, keepdims=True) + s                # (TB, 1)
        better = chunk_max > best_score        # strict: earlier chunk wins ties
        best_idx = jnp.where(better, chunk_idx, best_idx)
        best_score = jnp.where(better, chunk_max, best_score)

    # Lane-dense store: one (1, TB) int32 row per tile (no 1/128-lane vst).
    idx_ref[...] = best_idx[:, 0][None, :]


def _round_up(n, m):
    return ((n + m - 1) // m) * m


def vector_quantize(x, codebook, *, tb=2048, vmem_limit_bytes=48 * 1024 * 1024):
    """x: (B, D) f32, codebook: (K, D) f32 -> (quantized (B, D), closest (B,) i32).

    tb: batch rows per grid step.  Rounded to a multiple of 128 and clamped so
    the grid keeps >= 2 steps when B allows (both v7x TensorCores get work).
    With small D each step's DMA is tiny, so a large tb amortizes the per-step
    pipeline overhead; the chunked argmax keeps live temporaries at roughly
    3 * tb * 512 * 4 B regardless of K, fitting the explicit VMEM budget on
    v5e/v6e (128 MiB physical) and v7x (64 MiB physical).
    """
    B, D = x.shape
    K, D2 = codebook.shape
    assert D == D2

    # Hoisted once, reused by every grid step (grid-invariant index_maps):
    #   codebook^T as (D, K): lane-dense, native MXU (M,Kc)x(Kc,N) feed.
    #   0.5 * ||w_k||^2 as a (1, K) row.
    w_t = jnp.transpose(codebook)
    c2h = 0.5 * jnp.sum(codebook * codebook, axis=1)[None, :]

    tb = max(128, min(_round_up(tb, 128), _round_up(pl.cdiv(B, 2), 128)))
    n_tiles = pl.cdiv(B, tb)   # no jnp.pad: Pallas masks the partial last block

    idx = pl.pallas_call(
        _vq_kernel,
        out_shape=jax.ShapeDtypeStruct((1, B), jnp.int32),
        grid=(n_tiles,),
        in_specs=[
            pl.BlockSpec((tb, D), lambda i: (i, 0)),   # x tile, streamed per step
            pl.BlockSpec((D, K), lambda i: (0, 0)),    # codebook^T, VMEM-resident
            pl.BlockSpec((1, K), lambda i: (0, 0)),    # 0.5*||w||^2, resident
        ],
        out_specs=pl.BlockSpec((1, tb), lambda i: (0, i)),
        compiler_params=pltpu.CompilerParams(
            dimension_semantics=("parallel",),         # shard tiles on v7x's 2 TCs
            vmem_limit_bytes=vmem_limit_bytes),
    )(x, w_t, c2h)

    closest = idx[0]
    # quantized = one_hot(closest, K) @ W  ==  row gather of the codebook (XLA).
    # (Fusing this gather into the kernel only pays off for large D; at small
    #  latent_dim the separate XLA gather is negligible.)
    quantized = jnp.take(codebook, closest, axis=0)
    return quantized, closest


if __name__ == "__main__":
    codebook_size = 1024     # module default; exercises the 2-chunk argmax path
    latent_dim = 8
    batch = 200              # not a multiple of 128: exercises the partial block

    key = jax.random.PRNGKey(0)
    k_x, k_w = jax.random.split(key)

    # nn.Embedding(codebook_size, latent_dim).weight ~ U(-1/K, 1/K)
    codebook = jax.random.uniform(
        k_w, (codebook_size, latent_dim), dtype=jnp.float32,
        minval=-1.0 / codebook_size, maxval=1.0 / codebook_size)
    x = jax.random.normal(k_x, (batch, latent_dim), dtype=jnp.float32)

    quantized, closest = vector_quantize(x, codebook)
    jax.block_until_ready((quantized, closest))

    # Reference in plain JAX: same expanded-distance math as the PyTorch forward.
    cl = jnp.matmul(x, codebook.T, precision=lax.Precision.HIGHEST)
    dist = (jnp.sum(x ** 2, axis=1, keepdims=True)
            - 2.0 * cl
            + jnp.sum(codebook ** 2, axis=1)[None, :])
    closest_ref = jnp.argmin(dist, axis=-1).astype(jnp.int32)

    rows = jnp.arange(batch)
    # Kernel picks must be (numerically) optimal; exact index equality is only
    # expected away from fp32 near-ties (the half-norm formulation can resolve
    # near-equidistant codewords differently under rounding).
    assert bool(jnp.all((closest >= 0) & (closest < codebook_size)))
    assert bool(jnp.all(dist[rows, closest] - dist[rows, closest_ref] <= 1e-4))
    assert float(jnp.mean((closest == closest_ref).astype(jnp.float32))) >= 0.90
    assert bool(jnp.array_equal(quantized, codebook[closest]))

    print("KERNEL_OK")
</pallas_src>

<mosaic_0001>
module attributes {stable_mosaic.version = 11 : i64} {
  func.func @_vq_kernel(%arg0: i32, %arg1: memref<128x8xf32, #tpu.memory_space<vmem>>, %arg2: memref<8x1024xf32, #tpu.memory_space<vmem>>, %arg3: memref<1x1024xf32, #tpu.memory_space<vmem>>, %arg4: memref<1x128xi32, #tpu.memory_space<vmem>>) attributes {dimension_semantics = [#tpu.dimension_semantics<parallel>], iteration_bounds = array<i64: 2>, scalar_prefetch = 0 : i64, scratch_operands = 0 : i64, tpu.core_type = #tpu.core_type<tc>, window_params = [{transform_indices = @transform_0, window_bounds = array<i64: 128, 8>}, {pipeline_mode = #tpu.pipeline_mode<synchronous>, transform_indices = @transform_1, window_bounds = array<i64: 8, 1024>}, {pipeline_mode = #tpu.pipeline_mode<synchronous>, transform_indices = @transform_2, window_bounds = array<i64: 1, 1024>}, {transform_indices = @transform_3, window_bounds = array<i64: 1, 128>}]} {
    %c0 = arith.constant 0 : index
    %c0_0 = arith.constant 0 : index
    %0 = vector.load %arg1[%c0, %c0_0] : memref<128x8xf32, #tpu.memory_space<vmem>>, vector<128x8xf32>
    %cst = arith.constant 0xFF800000 : f32
    %1 = vector.broadcast %cst : f32 to vector<128x1xf32>
    %c0_i32 = arith.constant 0 : i32
    %2 = vector.broadcast %c0_i32 : i32 to vector<128x1xi32>
    %c0_1 = arith.constant 0 : index
    %c0_2 = arith.constant 0 : index
    %3 = vector.load %arg2[%c0_1, %c0_2] : memref<8x1024xf32, #tpu.memory_space<vmem>>, vector<8x512xf32>
    %cst_3 = arith.constant dense<0.000000e+00> : vector<128x512xf32>
    %4 = tpu.matmul %0, %3, %cst_3 {dimension_numbers = #tpu.dot_dimension_numbers<[1], [0], [0], [1], [0, 0, 1, 1], [], []>} : vector<128x8xf32>, vector<8x512xf32>, vector<128x512xf32> -> vector<128x512xf32>
    %c0_4 = arith.constant 0 : index
    %c0_5 = arith.constant 0 : index
    %5 = vector.load %arg3[%c0_4, %c0_5] : memref<1x1024xf32, #tpu.memory_space<vmem>>, vector<1x512xf32>
    %6 = vector.broadcast %5 : vector<1x512xf32> to vector<128x512xf32>
    %7 = arith.subf %4, %6 : vector<128x512xf32>
    %cst_6 = arith.constant dense<0xFF800000> : vector<128xf32>
    %8 = vector.multi_reduction <maximumf>, %7, %cst_6 [1] : vector<128x512xf32> to vector<128xf32>
    %9 = vector.shape_cast %8 : vector<128xf32> to vector<128x1xf32>
    %10 = tpu.iota {dimensions = array<i32: 1>} : vector<128x512xi32>
    %11 = vector.broadcast %9 : vector<128x1xf32> to vector<128x512xf32>
    %12 = arith.cmpf oeq, %7, %11 : vector<128x512xf32>
    %c512_i32 = arith.constant 512 : i32
    %13 = vector.broadcast %c512_i32 : i32 to vector<128x512xi32>
    %14 = arith.select %12, %10, %13 : vector<128x512xi1>, vector<128x512xi32>
    %cst_7 = arith.constant dense<2147483647> : vector<128xi32>
    %15 = vector.multi_reduction <minsi>, %14, %cst_7 [1] : vector<128x512xi32> to vector<128xi32>
    %16 = vector.shape_cast %15 : vector<128xi32> to vector<128x1xi32>
    %c0_i32_8 = arith.constant 0 : i32
    %17 = vector.broadcast %c0_i32_8 : i32 to vector<128x1xi32>
    %18 = arith.addi %16, %17 : vector<128x1xi32>
    %19 = arith.cmpf ogt, %9, %1 : vector<128x1xf32>
    %20 = arith.select %19, %18, %2 : vector<128x1xi1>, vector<128x1xi32>
    %21 = arith.select %19, %9, %1 : vector<128x1xi1>, vector<128x1xf32>
    %c0_9 = arith.constant 0 : index
    %c512 = arith.constant 512 : index
    %22 = vector.load %arg2[%c0_9, %c512] : memref<8x1024xf32, #tpu.memory_space<vmem>>, vector<8x512xf32>
    %cst_10 = arith.constant dense<0.000000e+00> : vector<128x512xf32>
    %23 = tpu.matmul %0, %22, %cst_10 {dimension_numbers = #tpu.dot_dimension_numbers<[1], [0], [0], [1], [0, 0, 1, 1], [], []>} : vector<128x8xf32>, vector<8x512xf32>, vector<128x512xf32> -> vector<128x512xf32>
    %c0_11 = arith.constant 0 : index
    %c512_12 = arith.constant 512 : index
    %24 = vector.load %arg3[%c0_11, %c512_12] : memref<1x1024xf32, #tpu.memory_space<vmem>>, vector<1x512xf32>
    %25 = vector.broadcast %24 : vector<1x512xf32> to vector<128x512xf32>
    %26 = arith.subf %23, %25 : vector<128x512xf32>
    %cst_13 = arith.constant dense<0xFF800000> : vector<128xf32>
    %27 = vector.multi_reduction <maximumf>, %26, %cst_13 [1] : vector<128x512xf32> to vector<128xf32>
    %28 = vector.shape_cast %27 : vector<128xf32> to vector<128x1xf32>
    %29 = tpu.iota {dimensions = array<i32: 1>} : vector<128x512xi32>
    %30 = vector.broadcast %28 : vector<128x1xf32> to vector<128x512xf32>
    %31 = arith.cmpf oeq, %26, %30 : vector<128x512xf32>
    %c512_i32_14 = arith.constant 512 : i32
    %32 = vector.broadcast %c512_i32_14 : i32 to vector<128x512xi32>
    %33 = arith.select %31, %29, %32 : vector<128x512xi1>, vector<128x512xi32>
    %cst_15 = arith.constant dense<2147483647> : vector<128xi32>
    %34 = vector.multi_reduction <minsi>, %33, %cst_15 [1] : vector<128x512xi32> to vector<128xi32>
    %35 = vector.shape_cast %34 : vector<128xi32> to vector<128x1xi32>
    %c512_i32_16 = arith.constant 512 : i32
    %36 = vector.broadcast %c512_i32_16 : i32 to vector<128x1xi32>
    %37 = arith.addi %35, %36 : vector<128x1xi32>
    %38 = arith.cmpf ogt, %28, %21 : vector<128x1xf32>
    %39 = arith.select %38, %37, %20 : vector<128x1xi1>, vector<128x1xi32>
    %40 = vector.shape_cast %39 : vector<128x1xi32> to vector<128xi32>
    %41 = vector.shape_cast %40 : vector<128xi32> to vector<1x128xi32>
    %c0_17 = arith.constant 0 : index
    %c0_18 = arith.constant 0 : index
    %42 = vector.load %arg4[%c0_17, %c0_18] : memref<1x128xi32, #tpu.memory_space<vmem>>, vector<1x128xi32>
    tpu.vector_store %arg4[%c0_17, %c0_18], %41 {strides = array<i32>} : memref<1x128xi32, #tpu.memory_space<vmem>>, vector<1x128xi32>,
    return
  }
  func.func @transform_0(%arg0: i32) -> (i32, i32) {
    %c0_i32 = arith.constant 0 : i32
    %c0_i32_0 = arith.constant 0 : i32
    return %arg0, %c0_i32 : i32, i32
  }
  func.func @transform_1(%arg0: i32) -> (i32, i32) {
    %c0_i32 = arith.constant 0 : i32
    %c0_i32_0 = arith.constant 0 : i32
    %c0_i32_1 = arith.constant 0 : i32
    return %c0_i32, %c0_i32_0 : i32, i32
  }
  func.func @transform_2(%arg0: i32) -> (i32, i32) {
    %c0_i32 = arith.constant 0 : i32
    %c0_i32_0 = arith.constant 0 : i32
    %c0_i32_1 = arith.constant 0 : i32
    return %c0_i32, %c0_i32_0 : i32, i32
  }
  func.func @transform_3(%arg0: i32) -> (i32, i32) {
    %c0_i32 = arith.constant 0 : i32
    %c0_i32_0 = arith.constant 0 : i32
    return %c0_i32, %arg0 : i32, i32
  }
}

</mosaic_0001>

<llo_original>
// kernel: tpu_custom_call.1
$region0: #{tpu_custom_call.1}
  #allocation0 [shape = 'u32[]', space=smem, size = 0x4, offset = 0x4, fixed_abs, tag = 'smem constant byte address 0x4 - core index']
  #allocation1 [shape = 'u32[144,128]{1,0:T(1,128)}', space=vmem, size = 0x12000, scoped, tag = 'internal scratch']
  %s0 = inlined_call_operand.vmem [shape: f32[200,8], index: 0, kind: input, shape index: {}]
  %s1 = inlined_call_operand.vmem [shape: f32[8,1024], index: 1, kind: input, shape index: {}]
  %s2 = inlined_call_operand.vmem [shape: f32[1,1024], index: 2, kind: input, shape index: {}]
  %s3 = inlined_call_operand.hbm [shape: s32[1,200], index: 3, kind: output, shape index: {}]
  %s4 = sld [smem:[#allocation0]]
  $region45: #{tpu_custom_call.1} parent=0
    _
  %s6 = ssub.s32 1, %s4
  %s7 = scalar_select 0, %s6, %s4
  $region1: #{tpu_custom_call.1} parent=0
    #allocation2 [shape = 'u8[1024]{0}', space=vmem, size = 0x400, scoped, tag = 'output window, operand 0']
    #allocation3 [shape = 's32[2]{0}', space=sflag, size = 0x8, scoped, tag = 'scoped memory for tpu_custom_call.1']
    %8 = vsyncpa [#allocation3], 0
    %s9 = scalar_lea.sflag [#allocation3], 1
    %10 = vsyncpa %s9, 0
    loop: start=0, step=1, limit=4
    $region2: #{tpu_custom_call.1} parent=1 // loop_pre_header
      _
    $region3: #{tpu_custom_call.1} parent=1 // loop_header
      %s12 = sphi 0, %s16
      %p13 = scmp.ge.s32.totalorder %s12, 4
      %s22 = sphi 0, %s24
      %s25 = sphi 0, %s22
      %s26 = sphi 0, %s25
      %s42 = sphi 0, %s26
      %s46 = sphi 0, %s46
      %s48 = sphi 0, %s46
      %s49 = sphi 0, %s48
      %s63 = sphi 0, %s49
      %s67 = sphi 0, %s67
      %s69 = sphi 0, %s67
      %s70 = sphi 0, %s69
      %s84 = sphi 0, %s70
      %s90 = sphi 0, %s92
      %s93 = sphi 0, %s90
      %s94 = sphi 0, %s93
      %s110 = sphi 0, %s94
    $region4: #{tpu_custom_call.1} parent=1 // loop_header_branch
      %15 = sbr.rel (%p13) target = $region8
    $region5: #{tpu_custom_call.1} parent=1 // loop_body
      %s17 = ssub.s32 %s12, 1
      %s18 = ssub.s32 %s12, 2
      %s19 = sadd.s32 %s12, 1
      %s20 = ssub.s32 %s12, %s19
      %p21 = scmp.eq.s32.totalorder %s20, 0
      %s23 = sadd.s32 %s22, 1
      %s24 = scalar_select %p21, %s22, %s23
      %p27 = pneg %p21
      %p28 = scmp.eq.s32.totalorder %s12, 1
      %p29 = por %p27, %p28
      %p30 = scmp.ne.s32.totalorder %s22, %s25
      %p31 = scmp.eq.s32.totalorder %s12, 0
      %p32 = por %p30, %p31
      %p33 = scmp.ne.s32.totalorder %s22, %s25
      %p34 = scmp.eq.s32.totalorder %s17, 1
      %p35 = por %p33, %p34
      %p36 = scmp.ne.s32.totalorder %s25, %s26
      %p37 = scmp.eq.s32.totalorder %s17, 0
      %p38 = por %p36, %p37
      %p39 = scmp.ne.s32.totalorder %s25, %s26
      %p40 = scmp.eq.s32.totalorder %s18, 1
      %p41 = por %p39, %p40
      %p43 = scmp.ne.s32.totalorder %s26, %s42
      %p44 = scmp.eq.s32.totalorder %s18, 0
      %p45 = por %p43, %p44
      %s47 = sadd.s32 %s46, 1
      %p50 = scmp.eq.s32.totalorder %s12, 1
      %p51 = scmp.ne.s32.totalorder %s46, %s48
      %p52 = scmp.eq.s32.totalorder %s12, 0
      %p53 = por %p51, %p52
      %p54 = scmp.ne.s32.totalorder %s46, %s48
      %p55 = scmp.eq.s32.totalorder %s17, 1
      %p56 = por %p54, %p55
      %p57 = scmp.ne.s32.totalorder %s48, %s49
      %p58 = scmp.eq.s32.totalorder %s17, 0
      %p59 = por %p57, %p58
      %p60 = scmp.ne.s32.totalorder %s48, %s49
      %p61 = scmp.eq.s32.totalorder %s18, 1
      %p62 = por %p60, %p61
      %p64 = scmp.ne.s32.totalorder %s49, %s63
      %p65 = scmp.eq.s32.totalorder %s18, 0
      %p66 = por %p64, %p65
      %s68 = sadd.s32 %s67, 1
      %p71 = scmp.eq.s32.totalorder %s12, 1
      %p72 = scmp.ne.s32.totalorder %s67, %s69
      %p73 = scmp.eq.s32.totalorder %s12, 0
      %p74 = por %p72, %p73
      %p75 = scmp.ne.s32.totalorder %s67, %s69
      %p76 = scmp.eq.s32.totalorder %s17, 1
      %p77 = por %p75, %p76
      %p78 = scmp.ne.s32.totalorder %s69, %s70
      %p79 = scmp.eq.s32.totalorder %s17, 0
      %p80 = por %p78, %p79
      %p81 = scmp.ne.s32.totalorder %s69, %s70
      %p82 = scmp.eq.s32.totalorder %s18, 1
      %p83 = por %p81, %p82
      %p85 = scmp.ne.s32.totalorder %s70, %s84
      %p86 = scmp.eq.s32.totalorder %s18, 0
      %p87 = por %p85, %p86
      %s88 = ssub.s32 %s12, %s19
      %p89 = scmp.eq.s32.totalorder %s88, 0
      %s91 = sadd.s32 %s90, 1
      %s92 = scalar_select %p89, %s90, %s91
      %p95 = pneg %p89
      %p96 = scmp.eq.s32.totalorder %s12, 1
      %p97 = por %p95, %p96
      %p98 = scmp.ne.s32.totalorder %s90, %s93
      %p99 = scmp.eq.s32.totalorder %s12, 0
      %p100 = por %p98, %p99
      %p101 = scmp.ne.s32.totalorder %s90, %s93
      %p102 = scmp.eq.s32.totalorder %s17, 1
      %p103 = por %p101, %p102
      %p104 = scmp.ne.s32.totalorder %s93, %s94
      %p105 = scmp.eq.s32.totalorder %s17, 0
      %p106 = por %p104, %p105
      %p107 = scmp.ne.s32.totalorder %s93, %s94
      %p108 = scmp.eq.s32.totalorder %s18, 1
      %p109 = por %p107, %p108
      %p111 = scmp.ne.s32.totalorder %s94, %s110
      %p112 = scmp.eq.s32.totalorder %s18, 0
      %p113 = por %p111, %p112
      %p114 = scmp.le.s32.totalorder 1, %s12
      %p115 = scmp.lt.s32.totalorder %s12, 3
      %p116 = pnand %p114, %p115
      %p117 = pneg %p116
      // Predicated region
      $region9: #{tpu_custom_call.1} parent=5 // pred_check
        _
      $region10: #{tpu_custom_call.1} parent=5 // pred_check_branch
        %119 = sbr.rel (%p116) target = $region12
      $region11: #{tpu_custom_call.1} parent=5 // pred_region
        %s120 = ssub.s32 %s12, 1
        // Predicated region
        $region13: #{tpu_custom_call.1} parent=11 // pred_check
          %p121 = pneg %p59
        $region14: #{tpu_custom_call.1} parent=11 // pred_check_branch
          %123 = sbr.rel (%p121) target = $region16
        $region15: #{tpu_custom_call.1} parent=11 // pred_region
          _
        $region16: #{tpu_custom_call.1} parent=11 // pred_fallthru
          _
        // Predicated region
        $region17: #{tpu_custom_call.1} parent=11 // pred_check
          %p124 = pneg %p80
        $region18: #{tpu_custom_call.1} parent=11 // pred_check_branch
          %126 = sbr.rel (%p124) target = $region20
        $region19: #{tpu_custom_call.1} parent=11 // pred_region
          _
        $region20: #{tpu_custom_call.1} parent=11 // pred_fallthru
          _
      $region12: #{tpu_custom_call.1} parent=5 // pred_fallthru
        _
      %p127 = scmp.lt.s32.totalorder %s12, 2
      // Predicated region
      $region21: #{tpu_custom_call.1} parent=5 // pred_check
        %p128 = pneg %p127
      $region22: #{tpu_custom_call.1} parent=5 // pred_check_branch
        %130 = sbr.rel (%p128) target = $region24
      $region23: #{tpu_custom_call.1} parent=5 // pred_region
        // Predicated region
        $region25: #{tpu_custom_call.1} parent=23 // pred_check
          %p131 = pneg %p32
        $region26: #{tpu_custom_call.1} parent=23 // pred_check_branch
          %133 = sbr.rel (%p131) target = $region28
        $region27: #{tpu_custom_call.1} parent=23 // pred_region
          %s134 = smul.u32 16, %s12
          %s135 = ssub.s32 25, %s134
          %p136 = scmp.lt.s32.totalorder %s135, 16
          %s137 = scalar_select %p136, %s135, 16
          %s138 = smul.u32 128, %s137
          %p139 = scmp.lt.s32.totalorder %s134, 24
          %s140 = scalar_select %p139, %s134, 24
          %s141 = smul.addr %s140, 8
          %s142 = scalar_lea.vmem %s0, %s141
          %s143 = smul.u32 16, %s12
          %s144 = ssub.s32 25, %s143
          %p145 = scmp.lt.s32.totalorder %s144, 16
          %s146 = scalar_select %p145, %s144, 16
          %s147 = smul.u32 128, %s146
        $region28: #{tpu_custom_call.1} parent=23 // pred_fallthru
          _
      $region24: #{tpu_custom_call.1} parent=5 // pred_fallthru
        _
      %p148 = scmp.le.s32.totalorder 1, %s12
      %p149 = scmp.lt.s32.totalorder %s12, 3
      %p150 = pnand %p148, %p149
      %p151 = pneg %p150
      // Predicated region
      $region29: #{tpu_custom_call.1} parent=5 // pred_check
        _
      $region30: #{tpu_custom_call.1} parent=5 // pred_check_branch
        %153 = sbr.rel (%p150) target = $region32
      $region31: #{tpu_custom_call.1} parent=5 // pred_region
        %s154 = ssub.s32 %s12, 1
        %s155 = smul.u32 16, %s17
        %s156 = ssub.s32 25, %s155
        %p157 = scmp.lt.s32.totalorder %s156, 16
        %s158 = scalar_select %p157, %s156, 16
        %s159 = smul.u32 128, %s158
        %p160 = scmp.lt.s32.totalorder %s155, 24
        %s161 = scalar_select %p160, %s155, 24
        %s162 = smul.addr %s161, 8
        %s163 = scalar_lea.vmem %s0, %s162
        %p164 = pneg %p38
        %p165 = pneg %p35
        %p166 = pneg %p59
        %p167 = pneg %p56
        %p168 = pneg %p80
        %p169 = pneg %p77
        %p170 = pneg %p106
        %p171 = pneg %p103
        %s172 = sand.u32 %s93, 1
        %s173 = scalar_lea.sflag [#allocation3], %s172
        %s174 = sand.u32 %s93, 1
        %s175 = scalar_lea.vmem [#allocation2], %s174
        %s176 = smul.u32 16, %s17
        %s177 = ssub.s32 25, %s176
        %p178 = scmp.lt.s32.totalorder %s177, 16
        %s179 = scalar_select %p178, %s177, 16
        %s180 = smul.u32 128, %s179
        %p181 = scmp.lt.s32.totalorder %s176, 24
        %s182 = scalar_select %p181, %s176, 24
        %s183 = smul.addr %s182, 8
        %s184 = scalar_lea.vmem %s0, %s183
        %s185 = smul.u32 16, %s17
        %s186 = ssub.s32 25, %s185
        %p187 = scmp.lt.s32.totalorder %s186, 16
        %s188 = scalar_select %p187, %s186, 16
        %s189 = smul.u32 128, %s188
        %v190 = vld [vmem:[%s184] sm:$0xff]
        %v191 = vld [vmem:[%s184 + $0x8] sm:$0xff]
        %v192 = vld [vmem:[%s184 + $0x10] sm:$0xff]
        %v193 = vld [vmem:[%s184 + $0x18] sm:$0xff]
        %v194 = vld [vmem:[%s184 + $0x20] sm:$0xff]
        %v195 = vld [vmem:[%s184 + $0x28] sm:$0xff]
        %v196 = vld [vmem:[%s184 + $0x30] sm:$0xff]
        %v197 = vld [vmem:[%s184 + $0x38] sm:$0xff]
        %v198 = vld [vmem:[%s184 + $0x40] sm:$0xff]
        %v199 = vld [vmem:[%s184 + $0x48] sm:$0xff]
        %v200 = vld [vmem:[%s184 + $0x50] sm:$0xff]
        %v201 = vld [vmem:[%s184 + $0x58] sm:$0xff]
        %v202 = vld [vmem:[%s184 + $0x60] sm:$0xff]
        %v203 = vld [vmem:[%s184 + $0x68] sm:$0xff]
        %v204 = vld [vmem:[%s184 + $0x70] sm:$0xff]
        %v205 = vld [vmem:[%s184 + $0x78] sm:$0xff]
        %v206 = vld [vmem:[%s1] sm:$0xff]
        %v207 = vld [vmem:[%s1 + $0x8] sm:$0xff]
        %v208 = vld [vmem:[%s1 + $0x10] sm:$0xff]
        %v209 = vld [vmem:[%s1 + $0x18] sm:$0xff]
        %vm210 = vcmask 64512
        %v212 = vsel %vm210, %v190, 0
        %v215 = vsel %vm210, %v191, 0
        %v218 = vsel %vm210, %v192, 0
        %v221 = vsel %vm210, %v193, 0
        %v224 = vsel %vm210, %v194, 0
        %v227 = vsel %vm210, %v195, 0
        %v230 = vsel %vm210, %v196, 0
        %v233 = vsel %vm210, %v197, 0
        %v236 = vsel %vm210, %v198, 0
        %v239 = vsel %vm210, %v199, 0
        %v242 = vsel %vm210, %v200, 0
        %v245 = vsel %vm210, %v201, 0
        %v248 = vsel %vm210, %v202, 0
        %v251 = vsel %vm210, %v203, 0
        %v254 = vsel %vm210, %v204, 0
        %v257 = vsel %vm210, %v205, 0
        %259 = vmatprep.subr.mxu0 %v207
        %260 = vmatpush1.msra.mxu0 %v206
        %261 = vmatprep.subr.mxu0 0.0
        %262 = vmatpush1.msra.mxu0 0.0
        %263 = vmatprep.subr.mxu0 0.0
        %264 = vmatpush1.msra.mxu0 0.0
        %265 = vmatprep.subr.mxu0 0.0
        %266 = vmatpush1.msra.mxu0 0.0
        %267 = vmatprep.subr.mxu0 0.0
        %268 = vmatpush1.msra.mxu0 0.0
        %269 = vmatprep.subr.mxu0 0.0
        %270 = vmatpush1.msra.mxu0 0.0
        %271 = vmatprep.subr.mxu0 0.0
        %272 = vmatpush1.msra.mxu0 0.0
        %273 = vmatprep.subr.mxu0 0.0
        %274 = vmatpush1.msra.mxu0 0.0
        %275 = vmatprep.subr.mxu0 0.0
        %276 = vmatpush1.msra.mxu0 0.0
        %277 = vmatprep.subr.mxu0 0.0
        %278 = vmatpush1.msra.mxu0 0.0
        %279 = vmatprep.subr.mxu0 0.0
        %280 = vmatpush1.msra.mxu0 0.0
        %281 = vmatprep.subr.mxu0 0.0
        %282 = vmatpush1.msra.mxu0 0.0
        %283 = vmatprep.subr.mxu0 0.0
        %284 = vmatpush1.msra.mxu0 0.0
        %285 = vmatprep.subr.mxu0 0.0
        %286 = vmatpush1.msra.mxu0 0.0
        %287 = vmatprep.subr.mxu0 0.0
        %288 = vmatpush1.msra.mxu0 0.0
        %289 = vmatprep.subr.mxu0 0.0
        %290 = vmatpush1.msra.mxu0 0.0
        %291 = vmatprep.subr.mxu0 0.0
        %292 = vmatpush1.msra.mxu0 0.0
        %293 = vmatprep.subr.mxu0 0.0
        %294 = vmatpush1.msra.mxu0 0.0
        %295 = vmatprep.subr.mxu0 0.0
        %296 = vmatpush1.msra.mxu0 0.0
        %297 = vmatprep.subr.mxu0 0.0
        %298 = vmatpush1.msra.mxu0 0.0
        %299 = vmatprep.subr.mxu0 0.0
        %300 = vmatpush1.msra.mxu0 0.0
        %301 = vmatprep.subr.mxu0 0.0
        %302 = vmatpush1.msra.mxu0 0.0
        %303 = vmatprep.subr.mxu0 0.0
        %304 = vmatpush1.msra.mxu0 0.0
        %305 = vmatprep.subr.mxu0 0.0
        %306 = vmatpush1.msra.mxu0 0.0
        %307 = vmatprep.subr.mxu0 0.0
        %308 = vmatpush1.msra.mxu0 0.0
        %309 = vmatprep.subr.mxu0 0.0
        %310 = vmatpush1.msra.mxu0 0.0
        %311 = vmatprep.subr.mxu0 0.0
        %312 = vmatpush1.msra.mxu0 0.0
        %313 = vmatprep.subr.mxu0 0.0
        %314 = vmatpush1.msra.mxu0 0.0
        %315 = vmatprep.subr.mxu0 0.0
        %316 = vmatpush1.msra.mxu0 0.0
        %317 = vmatprep.subr.mxu0 0.0
        %318 = vmatpush1.msra.mxu0 0.0
        %319 = vmatprep.subr.mxu0 0.0
        %320 = vmatpush1.msra.mxu0 0.0
        %321 = vmatprep.subr.mxu0 0.0
        %322 = vmatpush1.msra.mxu0 0.0
        %323 = vmatprep.mubr.f32.mxu0 0.0
        %324 = vmatmul.mubr.f32.gmra.mrb[0].mxu0 %v212
        %v325 = vpop.f32.mrb[0].mxu0
        %v326 = vadd.f32 0.0, %v325
        %v327 = vpop.f32.mrb[0].mxu0
        %v328 = vadd.f32 0.0, %v327
        %329 = vmatprep.mubr.f32.mxu0 0.0
        %330 = vmatmul.mubr.f32.gmra.mrb[0].mxu0 %v215
        %v331 = vpop.f32.mrb[0].mxu0
        %v332 = vadd.f32 0.0, %v331
        %v333 = vpop.f32.mrb[0].mxu0
        %v334 = vadd.f32 0.0, %v333
        %335 = vmatprep.mubr.f32.mxu0 0.0
        %336 = vmatmul.mubr.f32.gmra.mrb[0].mxu0 %v218
        %v337 = vpop.f32.mrb[0].mxu0
        %v338 = vadd.f32 0.0, %v337
        %v339 = vpop.f32.mrb[0].mxu0
        %v340 = vadd.f32 0.0, %v339
        %341 = vmatprep.mubr.f32.mxu0 0.0
        %342 = vmatmul.mubr.f32.gmra.mrb[0].mxu0 %v221
        %v343 = vpop.f32.mrb[0].mxu0
        %v344 = vadd.f32 0.0, %v343
        %v345 = vpop.f32.mrb[0].mxu0
        %v346 = vadd.f32 0.0, %v345
        %347 = vmatprep.mubr.f32.mxu0 0.0
        %348 = vmatmul.mubr.f32.gmra.mrb[0].mxu0 %v224
        %v349 = vpop.f32.mrb[0].mxu0
        %v350 = vadd.f32 0.0, %v349
        %v351 = vpop.f32.mrb[0].mxu0
        %v352 = vadd.f32 0.0, %v351
        %353 = vmatprep.mubr.f32.mxu0 0.0
        %354 = vmatmul.mubr.f32.gmra.mrb[0].mxu0 %v227
        %v355 = vpop.f32.mrb[0].mxu0
        %v356 = vadd.f32 0.0, %v355
        %v357 = vpop.f32.mrb[0].mxu0
        %v358 = vadd.f32 0.0, %v357
        %359 = vmatprep.mubr.f32.mxu0 0.0
        %360 = vmatmul.mubr.f32.gmra.mrb[0].mxu0 %v230
        %v361 = vpop.f32.mrb[0].mxu0
        %v362 = vadd.f32 0.0, %v361
        %v363 = vpop.f32.mrb[0].mxu0
        %v364 = vadd.f32 0.0, %v363
        %365 = vmatprep.mubr.f32.mxu0 0.0
        %366 = vmatmul.mubr.f32.gmra.mrb[0].mxu0 %v233
        %v367 = vpop.f32.mrb[0].mxu0
        %v368 = vadd.f32 0.0, %v367
        %v369 = vpop.f32.mrb[0].mxu0
        %v370 = vadd.f32 0.0, %v369
        %371 = vmatprep.mubr.f32.mxu0 0.0
        %372 = vmatmul.mubr.f32.gmra.mrb[0].mxu0 %v236
        %v373 = vpop.f32.mrb[0].mxu0
        %v374 = vadd.f32 0.0, %v373
        %v375 = vpop.f32.mrb[0].mxu0
        %v376 = vadd.f32 0.0, %v375
        %377 = vmatprep.mubr.f32.mxu0 0.0
        %378 = vmatmul.mubr.f32.gmra.mrb[0].mxu0 %v239
        %v379 = vpop.f32.mrb[0].mxu0
        %v380 = vadd.f32 0.0, %v379
        %v381 = vpop.f32.mrb[0].mxu0
        %v382 = vadd.f32 0.0, %v381
        %383 = vmatprep.mubr.f32.mxu0 0.0
        %384 = vmatmul.mubr.f32.gmra.mrb[0].mxu0 %v242
        %v385 = vpop.f32.mrb[0].mxu0
        %v386 = vadd.f32 0.0, %v385
        %v387 = vpop.f32.mrb[0].mxu0
        %v388 = vadd.f32 0.0, %v387
        %389 = vmatprep.mubr.f32.mxu0 0.0
        %390 = vmatmul.mubr.f32.gmra.mrb[0].mxu0 %v245
        %v391 = vpop.f32.mrb[0].mxu0
        %v392 = vadd.f32 0.0, %v391
        %v393 = vpop.f32.mrb[0].mxu0
        %v394 = vadd.f32 0.0, %v393
        %395 = vmatprep.mubr.f32.mxu0 0.0
        %396 = vmatmul.mubr.f32.gmra.mrb[0].mxu0 %v248
        %v397 = vpop.f32.mrb[0].mxu0
        %v398 = vadd.f32 0.0, %v397
        %v399 = vpop.f32.mrb[0].mxu0
        %v400 = vadd.f32 0.0, %v399
        %401 = vmatprep.mubr.f32.mxu0 0.0
        %402 = vmatmul.mubr.f32.gmra.mrb[0].mxu0 %v251
        %v403 = vpop.f32.mrb[0].mxu0
        %v404 = vadd.f32 0.0, %v403
        %v405 = vpop.f32.mrb[0].mxu0
        %v406 = vadd.f32 0.0, %v405
        %407 = vmatprep.mubr.f32.mxu0 0.0
        %408 = vmatmul.mubr.f32.gmra.mrb[0].mxu0 %v254
        %v409 = vpop.f32.mrb[0].mxu0
        %v410 = vadd.f32 0.0, %v409
        %v411 = vpop.f32.mrb[0].mxu0
        %v412 = vadd.f32 0.0, %v411
        %413 = vmatprep.mubr.f32.mxu0 0.0
        %414 = vmatmul.mubr.f32.gmra.mrb[0].mxu0 %v257
        %v415 = vpop.f32.mrb[0].mxu0
        %v416 = vadd.f32 0.0, %v415
        %v417 = vpop.f32.mrb[0].mxu0
        %v418 = vadd.f32 0.0, %v417
        %419 = vdwg.mxu0
        %420 = vmatprep.subr.mxu0 %v209
        %421 = vmatpush1.msra.mxu0 %v208
        %422 = vmatprep.subr.mxu0 0.0
        %423 = vmatpush1.msra.mxu0 0.0
        %424 = vmatprep.subr.mxu0 0.0
        %425 = vmatpush1.msra.mxu0 0.0
        %426 = vmatprep.subr.mxu0 0.0
        %427 = vmatpush1.msra.mxu0 0.0
        %428 = vmatprep.subr.mxu0 0.0
        %429 = vmatpush1.msra.mxu0 0.0
        %430 = vmatprep.subr.mxu0 0.0
        %431 = vmatpush1.msra.mxu0 0.0
        %432 = vmatprep.subr.mxu0 0.0
        %433 = vmatpush1.msra.mxu0 0.0
        %434 = vmatprep.subr.mxu0 0.0
        %435 = vmatpush1.msra.mxu0 0.0
        %436 = vmatprep.subr.mxu0 0.0
        %437 = vmatpush1.msra.mxu0 0.0
        %438 = vmatprep.subr.mxu0 0.0
        %439 = vmatpush1.msra.mxu0 0.0
        %440 = vmatprep.subr.mxu0 0.0
        %441 = vmatpush1.msra.mxu0 0.0
        %442 = vmatprep.subr.mxu0 0.0
        %443 = vmatpush1.msra.mxu0 0.0
        %444 = vmatprep.subr.mxu0 0.0
        %445 = vmatpush1.msra.mxu0 0.0
        %446 = vmatprep.subr.mxu0 0.0
        %447 = vmatpush1.msra.mxu0 0.0
        %448 = vmatprep.subr.mxu0 0.0
        %449 = vmatpush1.msra.mxu0 0.0
        %450 = vmatprep.subr.mxu0 0.0
        %451 = vmatpush1.msra.mxu0 0.0
        %452 = vmatprep.subr.mxu0 0.0
        %453 = vmatpush1.msra.mxu0 0.0
        %454 = vmatprep.subr.mxu0 0.0
        %455 = vmatpush1.msra.mxu0 0.0
        %456 = vmatprep.subr.mxu0 0.0
        %457 = vmatpush1.msra.mxu0 0.0
        %458 = vmatprep.subr.mxu0 0.0
        %459 = vmatpush1.msra.mxu0 0.0
        %460 = vmatprep.subr.mxu0 0.0
        %461 = vmatpush1.msra.mxu0 0.0
        %462 = vmatprep.subr.mxu0 0.0
        %463 = vmatpush1.msra.mxu0 0.0
        %464 = vmatprep.subr.mxu0 0.0
        %465 = vmatpush1.msra.mxu0 0.0
        %466 = vmatprep.subr.mxu0 0.0
        %467 = vmatpush1.msra.mxu0 0.0
        %468 = vmatprep.subr.mxu0 0.0
        %469 = vmatpush1.msra.mxu0 0.0
        %470 = vmatprep.subr.mxu0 0.0
        %471 = vmatpush1.msra.mxu0 0.0
        %472 = vmatprep.subr.mxu0 0.0
        %473 = vmatpush1.msra.mxu0 0.0
        %474 = vmatprep.subr.mxu0 0.0
        %475 = vmatpush1.msra.mxu0 0.0
        %476 = vmatprep.subr.mxu0 0.0
        %477 = vmatpush1.msra.mxu0 0.0
        %478 = vmatprep.subr.mxu0 0.0
        %479 = vmatpush1.msra.mxu0 0.0
        %480 = vmatprep.subr.mxu0 0.0
        %481 = vmatpush1.msra.mxu0 0.0
        %482 = vmatprep.subr.mxu0 0.0
        %483 = vmatpush1.msra.mxu0 0.0
        %484 = vmatprep.mubr.f32.mxu0 0.0
        %485 = vmatmul.mubr.f32.gmra.mrb[0].mxu0 %v212
        %v486 = vpop.f32.mrb[0].mxu0
        %v487 = vadd.f32 0.0, %v486
        %v488 = vpop.f32.mrb[0].mxu0
        %v489 = vadd.f32 0.0, %v488
        %490 = vmatprep.mubr.f32.mxu0 0.0
        %491 = vmatmul.mubr.f32.gmra.mrb[0].mxu0 %v215
        %v492 = vpop.f32.mrb[0].mxu0
        %v493 = vadd.f32 0.0, %v492
        %v494 = vpop.f32.mrb[0].mxu0
        %v495 = vadd.f32 0.0, %v494
        %496 = vmatprep.mubr.f32.mxu0 0.0
        %497 = vmatmul.mubr.f32.gmra.mrb[0].mxu0 %v218
        %v498 = vpop.f32.mrb[0].mxu0
        %v499 = vadd.f32 0.0, %v498
        %v500 = vpop.f32.mrb[0].mxu0
        %v501 = vadd.f32 0.0, %v500
        %502 = vmatprep.mubr.f32.mxu0 0.0
        %503 = vmatmul.mubr.f32.gmra.mrb[0].mxu0 %v221
        %v504 = vpop.f32.mrb[0].mxu0
        %v505 = vadd.f32 0.0, %v504
        %v506 = vpop.f32.mrb[0].mxu0
        %v507 = vadd.f32 0.0, %v506
        %508 = vmatprep.mubr.f32.mxu0 0.0
        %509 = vmatmul.mubr.f32.gmra.mrb[0].mxu0 %v224
        %v510 = vpop.f32.mrb[0].mxu0
        %v511 = vadd.f32 0.0, %v510
        %v512 = vpop.f32.mrb[0].mxu0
        %v513 = vadd.f32 0.0, %v512
        %514 = vmatprep.mubr.f32.mxu0 0.0
        %515 = vmatmul.mubr.f32.gmra.mrb[0].mxu0 %v227
        %v516 = vpop.f32.mrb[0].mxu0
        %v517 = vadd.f32 0.0, %v516
        %v518 = vpop.f32.mrb[0].mxu0
        %v519 = vadd.f32 0.0, %v518
        %520 = vmatprep.mubr.f32.mxu0 0.0
        %521 = vmatmul.mubr.f32.gmra.mrb[0].mxu0 %v230
        %v522 = vpop.f32.mrb[0].mxu0
        %v523 = vadd.f32 0.0, %v522
        %v524 = vpop.f32.mrb[0].mxu0
        %v525 = vadd.f32 0.0, %v524
        %526 = vmatprep.mubr.f32.mxu0 0.0
        %527 = vmatmul.mubr.f32.gmra.mrb[0].mxu0 %v233
        %v528 = vpop.f32.mrb[0].mxu0
        %v529 = vadd.f32 0.0, %v528
        %v530 = vpop.f32.mrb[0].mxu0
        %v531 = vadd.f32 0.0, %v530
        %532 = vmatprep.mubr.f32.mxu0 0.0
        %533 = vmatmul.mubr.f32.gmra.mrb[0].mxu0 %v236
        %v534 = vpop.f32.mrb[0].mxu0
        %v535 = vadd.f32 0.0, %v534
        %v536 = vpop.f32.mrb[0].mxu0
        %v537 = vadd.f32 0.0, %v536
        %538 = vmatprep.mubr.f32.mxu0 0.0
        %539 = vmatmul.mubr.f32.gmra.mrb[0].mxu0 %v239
        %v540 = vpop.f32.mrb[0].mxu0
        %v541 = vadd.f32 0.0, %v540
        %v542 = vpop.f32.mrb[0].mxu0
        %v543 = vadd.f32 0.0, %v542
        %544 = vmatprep.mubr.f32.mxu0 0.0
        %545 = vmatmul.mubr.f32.gmra.mrb[0].mxu0 %v242
        %v546 = vpop.f32.mrb[0].mxu0
        %v547 = vadd.f32 0.0, %v546
        %v548 = vpop.f32.mrb[0].mxu0
        %v549 = vadd.f32 0.0, %v548
        %550 = vmatprep.mubr.f32.mxu0 0.0
        %551 = vmatmul.mubr.f32.gmra.mrb[0].mxu0 %v245
        %v552 = vpop.f32.mrb[0].mxu0
        %v553 = vadd.f32 0.0, %v552
        %v554 = vpop.f32.mrb[0].mxu0
        %v555 = vadd.f32 0.0, %v554
        %556 = vmatprep.mubr.f32.mxu0 0.0
        %557 = vmatmul.mubr.f32.gmra.mrb[0].mxu0 %v248
        %v558 = vpop.f32.mrb[0].mxu0
        %v559 = vadd.f32 0.0, %v558
        %v560 = vpop.f32.mrb[0].mxu0
        %v561 = vadd.f32 0.0, %v560
        %562 = vmatprep.mubr.f32.mxu0 0.0
        %563 = vmatmul.mubr.f32.gmra.mrb[0].mxu0 %v251
        %v564 = vpop.f32.mrb[0].mxu0
        %v565 = vadd.f32 0.0, %v564
        %v566 = vpop.f32.mrb[0].mxu0
        %v567 = vadd.f32 0.0, %v566
        %568 = vmatprep.mubr.f32.mxu0 0.0
        %569 = vmatmul.mubr.f32.gmra.mrb[0].mxu0 %v254
        %v570 = vpop.f32.mrb[0].mxu0
        %v571 = vadd.f32 0.0, %v570
        %v572 = vpop.f32.mrb[0].mxu0
        %v573 = vadd.f32 0.0, %v572
        %574 = vmatprep.mubr.f32.mxu0 0.0
        %575 = vmatmul.mubr.f32.gmra.mrb[0].mxu0 %v257
        %v576 = vpop.f32.mrb[0].mxu0
        %v577 = vadd.f32 0.0, %v576
        %v578 = vpop.f32.mrb[0].mxu0
        %v579 = vadd.f32 0.0, %v578
        %580 = vdwg.mxu0
        %v581 = vld [vmem:[%s2] sm:$0xf]
        %v583 = vlaneseq
        %v584 = vshrl.u32 %v583, 7
        %v585 = vsub.s32 0, %v584
        %v586 = vrot.slane %v581, %v585
        %v587 = vlaneseq
        %v588 = vshrl.u32 %v587, 7
        %v589 = vsub.s32 1, %v588
        %v590 = vrot.slane %v581, %v589
        %v591 = vlaneseq
        %v592 = vshrl.u32 %v591, 7
        %v593 = vsub.s32 2, %v592
        %v594 = vrot.slane %v581, %v593
        %v595 = vlaneseq
        %v596 = vshrl.u32 %v595, 7
        %v597 = vsub.s32 3, %v596
        %v598 = vrot.slane %v581, %v597
        %v603 = vsub.f32 %v326, %v586
        %v604 = vsub.f32 %v328, %v590
        %v605 = vsub.f32 %v487, %v594
        %v606 = vsub.f32 %v489, %v598
        %v607 = vsub.f32 %v332, %v586
        %v608 = vsub.f32 %v334, %v590
        %v609 = vsub.f32 %v493, %v594
        %v610 = vsub.f32 %v495, %v598
        %v611 = vsub.f32 %v338, %v586
        %v612 = vsub.f32 %v340, %v590
        %v613 = vsub.f32 %v499, %v594
        %v614 = vsub.f32 %v501, %v598
        %v615 = vsub.f32 %v344, %v586
        %v616 = vsub.f32 %v346, %v590
        %v617 = vsub.f32 %v505, %v594
        %v618 = vsub.f32 %v507, %v598
        %v619 = vsub.f32 %v350, %v586
        %v620 = vsub.f32 %v352, %v590
        %v621 = vsub.f32 %v511, %v594
        %v622 = vsub.f32 %v513, %v598
        %v623 = vsub.f32 %v356, %v586
        %v624 = vsub.f32 %v358, %v590
        %v625 = vsub.f32 %v517, %v594
        %v626 = vsub.f32 %v519, %v598
        %v627 = vsub.f32 %v362, %v586
        %v628 = vsub.f32 %v364, %v590
        %v629 = vsub.f32 %v523, %v594
        %v630 = vsub.f32 %v525, %v598
        %v631 = vsub.f32 %v368, %v586
        %v632 = vsub.f32 %v370, %v590
        %v633 = vsub.f32 %v529, %v594
        %v634 = vsub.f32 %v531, %v598
        %v635 = vsub.f32 %v374, %v586
        %v636 = vsub.f32 %v376, %v590
        %v637 = vsub.f32 %v535, %v594
        %v638 = vsub.f32 %v537, %v598
        %v639 = vsub.f32 %v380, %v586
        %v640 = vsub.f32 %v382, %v590
        %v641 = vsub.f32 %v541, %v594
        %v642 = vsub.f32 %v543, %v598
        %v643 = vsub.f32 %v386, %v586
        %v644 = vsub.f32 %v388, %v590
        %v645 = vsub.f32 %v547, %v594
        %v646 = vsub.f32 %v549, %v598
        %v647 = vsub.f32 %v392, %v586
        %v648 = vsub.f32 %v394, %v590
        %v649 = vsub.f32 %v553, %v594
        %v650 = vsub.f32 %v555, %v598
        %v651 = vsub.f32 %v398, %v586
        %v652 = vsub.f32 %v400, %v590
        %v653 = vsub.f32 %v559, %v594
        %v654 = vsub.f32 %v561, %v598
        %v655 = vsub.f32 %v404, %v586
        %v656 = vsub.f32 %v406, %v590
        %v657 = vsub.f32 %v565, %v594
        %v658 = vsub.f32 %v567, %v598
        %v659 = vsub.f32 %v410, %v586
        %v660 = vsub.f32 %v412, %v590
        %v661 = vsub.f32 %v571, %v594
        %v662 = vsub.f32 %v573, %v598
        %v663 = vsub.f32 %v416, %v586
        %v664 = vsub.f32 %v418, %v590
        %v665 = vsub.f32 %v577, %v594
        %v666 = vsub.f32 %v579, %v598
        %v667 = vmax.f32 %v603, %v604
        %v668 = vmax.f32 %v667, %v605
        %v669 = vmax.f32 %v668, %v606
        %670 = vmax.xlane.f32.xlu0 %v669
        %v671 = vpop.xlane.xlu0 %670
        %v672 = vmax.f32 %v607, %v608
        %v673 = vmax.f32 %v672, %v609
        %v674 = vmax.f32 %v673, %v610
        %675 = vmax.xlane.f32.xlu0 %v674
        %v676 = vpop.xlane.xlu0 %675
        %v677 = vmax.f32 %v611, %v612
        %v678 = vmax.f32 %v677, %v613
        %v679 = vmax.f32 %v678, %v614
        %680 = vmax.xlane.f32.xlu0 %v679
        %v681 = vpop.xlane.xlu0 %680
        %v682 = vmax.f32 %v615, %v616
        %v683 = vmax.f32 %v682, %v617
        %v684 = vmax.f32 %v683, %v618
        %685 = vmax.xlane.f32.xlu0 %v684
        %v686 = vpop.xlane.xlu0 %685
        %v687 = vmax.f32 %v619, %v620
        %v688 = vmax.f32 %v687, %v621
        %v689 = vmax.f32 %v688, %v622
        %690 = vmax.xlane.f32.xlu0 %v689
        %v691 = vpop.xlane.xlu0 %690
        %v692 = vmax.f32 %v623, %v624
        %v693 = vmax.f32 %v692, %v625
        %v694 = vmax.f32 %v693, %v626
        %695 = vmax.xlane.f32.xlu0 %v694
        %v696 = vpop.xlane.xlu0 %695
        %v697 = vmax.f32 %v627, %v628
        %v698 = vmax.f32 %v697, %v629
        %v699 = vmax.f32 %v698, %v630
        %700 = vmax.xlane.f32.xlu0 %v699
        %v701 = vpop.xlane.xlu0 %700
        %v702 = vmax.f32 %v631, %v632
        %v703 = vmax.f32 %v702, %v633
        %v704 = vmax.f32 %v703, %v634
        %705 = vmax.xlane.f32.xlu0 %v704
        %v706 = vpop.xlane.xlu0 %705
        %v707 = vmax.f32 %v635, %v636
        %v708 = vmax.f32 %v707, %v637
        %v709 = vmax.f32 %v708, %v638
        %710 = vmax.xlane.f32.xlu0 %v709
        %v711 = vpop.xlane.xlu0 %710
        %v712 = vmax.f32 %v639, %v640
        %v713 = vmax.f32 %v712, %v641
        %v714 = vmax.f32 %v713, %v642
        %715 = vmax.xlane.f32.xlu0 %v714
        %v716 = vpop.xlane.xlu0 %715
        %v717 = vmax.f32 %v643, %v644
        %v718 = vmax.f32 %v717, %v645
        %v719 = vmax.f32 %v718, %v646
        %720 = vmax.xlane.f32.xlu0 %v719
        %v721 = vpop.xlane.xlu0 %720
        %v722 = vmax.f32 %v647, %v648
        %v723 = vmax.f32 %v722, %v649
        %v724 = vmax.f32 %v723, %v650
        %725 = vmax.xlane.f32.xlu0 %v724
        %v726 = vpop.xlane.xlu0 %725
        %v727 = vmax.f32 %v651, %v652
        %v728 = vmax.f32 %v727, %v653
        %v729 = vmax.f32 %v728, %v654
        %730 = vmax.xlane.f32.xlu0 %v729
        %v731 = vpop.xlane.xlu0 %730
        %v732 = vmax.f32 %v655, %v656
        %v733 = vmax.f32 %v732, %v657
        %v734 = vmax.f32 %v733, %v658
        %735 = vmax.xlane.f32.xlu0 %v734
        %v736 = vpop.xlane.xlu0 %735
        %v737 = vmax.f32 %v659, %v660
        %v738 = vmax.f32 %v737, %v661
        %v739 = vmax.f32 %v738, %v662
        %740 = vmax.xlane.f32.xlu0 %v739
        %v741 = vpop.xlane.xlu0 %740
        %v742 = vmax.f32 %v663, %v664
        %v743 = vmax.f32 %v742, %v665
        %v744 = vmax.f32 %v743, %v666
        %745 = vmax.xlane.f32.xlu0 %v744
        %v746 = vpop.xlane.xlu0 %745
        %v747 = vlaneseq
        %v748 = vand.u32 %v747, 127
        %v749 = vadd.s32 %v748, 128
        %v750 = vadd.s32 %v748, 256
        %v751 = vadd.s32 %v748, 384
        %vm752 = vcmp.eq.f32.partialorder %v603, %v671
        %vm753 = vcmp.eq.f32.partialorder %v604, %v671
        %vm754 = vcmp.eq.f32.partialorder %v605, %v671
        %vm755 = vcmp.eq.f32.partialorder %v606, %v671
        %vm756 = vcmp.eq.f32.partialorder %v607, %v676
        %vm757 = vcmp.eq.f32.partialorder %v608, %v676
        %vm758 = vcmp.eq.f32.partialorder %v609, %v676
        %vm759 = vcmp.eq.f32.partialorder %v610, %v676
        %vm760 = vcmp.eq.f32.partialorder %v611, %v681
        %vm761 = vcmp.eq.f32.partialorder %v612, %v681
        %vm762 = vcmp.eq.f32.partialorder %v613, %v681
        %vm763 = vcmp.eq.f32.partialorder %v614, %v681
        %vm764 = vcmp.eq.f32.partialorder %v615, %v686
        %vm765 = vcmp.eq.f32.partialorder %v616, %v686
        %vm766 = vcmp.eq.f32.partialorder %v617, %v686
        %vm767 = vcmp.eq.f32.partialorder %v618, %v686
        %vm768 = vcmp.eq.f32.partialorder %v619, %v691
        %vm769 = vcmp.eq.f32.partialorder %v620, %v691
        %vm770 = vcmp.eq.f32.partialorder %v621, %v691
        %vm771 = vcmp.eq.f32.partialorder %v622, %v691
        %vm772 = vcmp.eq.f32.partialorder %v623, %v696
        %vm773 = vcmp.eq.f32.partialorder %v624, %v696
        %vm774 = vcmp.eq.f32.partialorder %v625, %v696
        %vm775 = vcmp.eq.f32.partialorder %v626, %v696
        %vm776 = vcmp.eq.f32.partialorder %v627, %v701
        %vm777 = vcmp.eq.f32.partialorder %v628, %v701
        %vm778 = vcmp.eq.f32.partialorder %v629, %v701
        %vm779 = vcmp.eq.f32.partialorder %v630, %v701
        %vm780 = vcmp.eq.f32.partialorder %v631, %v706
        %vm781 = vcmp.eq.f32.partialorder %v632, %v706
        %vm782 = vcmp.eq.f32.partialorder %v633, %v706
        %vm783 = vcmp.eq.f32.partialorder %v634, %v706
        %vm784 = vcmp.eq.f32.partialorder %v635, %v711
        %vm785 = vcmp.eq.f32.partialorder %v636, %v711
        %vm786 = vcmp.eq.f32.partialorder %v637, %v711
        %vm787 = vcmp.eq.f32.partialorder %v638, %v711
        %vm788 = vcmp.eq.f32.partialorder %v639, %v716
        %vm789 = vcmp.eq.f32.partialorder %v640, %v716
        %vm790 = vcmp.eq.f32.partialorder %v641, %v716
        %vm791 = vcmp.eq.f32.partialorder %v642, %v716
        %vm792 = vcmp.eq.f32.partialorder %v643, %v721
        %vm793 = vcmp.eq.f32.partialorder %v644, %v721
        %vm794 = vcmp.eq.f32.partialorder %v645, %v721
        %vm795 = vcmp.eq.f32.partialorder %v646, %v721
        %vm796 = vcmp.eq.f32.partialorder %v647, %v726
        %vm797 = vcmp.eq.f32.partialorder %v648, %v726
        %vm798 = vcmp.eq.f32.partialorder %v649, %v726
        %vm799 = vcmp.eq.f32.partialorder %v650, %v726
        %vm800 = vcmp.eq.f32.partialorder %v651, %v731
        %vm801 = vcmp.eq.f32.partialorder %v652, %v731
        %vm802 = vcmp.eq.f32.partialorder %v653, %v731
        %vm803 = vcmp.eq.f32.partialorder %v654, %v731
        %vm804 = vcmp.eq.f32.partialorder %v655, %v736
        %vm805 = vcmp.eq.f32.partialorder %v656, %v736
        %vm806 = vcmp.eq.f32.partialorder %v657, %v736
        %vm807 = vcmp.eq.f32.partialorder %v658, %v736
        %vm808 = vcmp.eq.f32.partialorder %v659, %v741
        %vm809 = vcmp.eq.f32.partialorder %v660, %v741
        %vm810 = vcmp.eq.f32.partialorder %v661, %v741
        %vm811 = vcmp.eq.f32.partialorder %v662, %v741
        %vm812 = vcmp.eq.f32.partialorder %v663, %v746
        %vm813 = vcmp.eq.f32.partialorder %v664, %v746
        %vm814 = vcmp.eq.f32.partialorder %v665, %v746
        %vm815 = vcmp.eq.f32.partialorder %v666, %v746
        %v816 = vsel %vm752, %v748, 512
        %v817 = vsel %vm753, %v749, 512
        %v818 = vsel %vm754, %v750, 512
        %v819 = vsel %vm755, %v751, 512
        %v820 = vsel %vm756, %v748, 512
        %v821 = vsel %vm757, %v749, 512
        %v822 = vsel %vm758, %v750, 512
        %v823 = vsel %vm759, %v751, 512
        %v824 = vsel %vm760, %v748, 512
        %v825 = vsel %vm761, %v749, 512
        %v826 = vsel %vm762, %v750, 512
        %v827 = vsel %vm763, %v751, 512
        %v828 = vsel %vm764, %v748, 512
        %v829 = vsel %vm765, %v749, 512
        %v830 = vsel %vm766, %v750, 512
        %v831 = vsel %vm767, %v751, 512
        %v832 = vsel %vm768, %v748, 512
        %v833 = vsel %vm769, %v749, 512
        %v834 = vsel %vm770, %v750, 512
        %v835 = vsel %vm771, %v751, 512
        %v836 = vsel %vm772, %v748, 512
        %v837 = vsel %vm773, %v749, 512
        %v838 = vsel %vm774, %v750, 512
        %v839 = vsel %vm775, %v751, 512
        %v840 = vsel %vm776, %v748, 512
        %v841 = vsel %vm777, %v749, 512
        %v842 = vsel %vm778, %v750, 512
        %v843 = vsel %vm779, %v751, 512
        %v844 = vsel %vm780, %v748, 512
        %v845 = vsel %vm781, %v749, 512
        %v846 = vsel %vm782, %v750, 512
        %v847 = vsel %vm783, %v751, 512
        %v848 = vsel %vm784, %v748, 512
        %v849 = vsel %vm785, %v749, 512
        %v850 = vsel %vm786, %v750, 512
        %v851 = vsel %vm787, %v751, 512
        %v852 = vsel %vm788, %v748, 512
        %v853 = vsel %vm789, %v749, 512
        %v854 = vsel %vm790, %v750, 512
        %v855 = vsel %vm791, %v751, 512
        %v856 = vsel %vm792, %v748, 512
        %v857 = vsel %vm793, %v749, 512
        %v858 = vsel %vm794, %v750, 512
        %v859 = vsel %vm795, %v751, 512
        %v860 = vsel %vm796, %v748, 512
        %v861 = vsel %vm797, %v749, 512
        %v862 = vsel %vm798, %v750, 512
        %v863 = vsel %vm799, %v751, 512
        %v864 = vsel %vm800, %v748, 512
        %v865 = vsel %vm801, %v749, 512
        %v866 = vsel %vm802, %v750, 512
        %v867 = vsel %vm803, %v751, 512
        %v868 = vsel %vm804, %v748, 512
        %v869 = vsel %vm805, %v749, 512
        %v870 = vsel %vm806, %v750, 512
        %v871 = vsel %vm807, %v751, 512
        %v872 = vsel %vm808, %v748, 512
        %v873 = vsel %vm809, %v749, 512
        %v874 = vsel %vm810, %v750, 512
        %v875 = vsel %vm811, %v751, 512
        %v876 = vsel %vm812, %v748, 512
        %v877 = vsel %vm813, %v749, 512
        %v878 = vsel %vm814, %v750, 512
        %v879 = vsel %vm815, %v751, 512
        %vm880 = vcmp.lt.s32.totalorder %v816, %v817
        %v881 = vsel %vm880, %v816, %v817
        %vm882 = vcmp.lt.s32.totalorder %v881, %v818
        %v883 = vsel %vm882, %v881, %v818
        %vm884 = vcmp.lt.s32.totalorder %v883, %v819
        %v885 = vsel %vm884, %v883, %v819
        %v886 = vand.u32 %v885, 65535
        %v887 = vshra.s32 %v885, 16
        %v888 = vcvt.s32.f32 %v886
        %v889 = vcvt.s32.f32 %v887
        %890 = vmin.xlane.f32.xlu0 %v889
        %v891 = vpop.xlane.xlu0 %890
        %vm892 = vcmp.eq.f32.partialorder %v889, %v891
        %v893 = vsel %vm892, %v888, inf
        %894 = vmin.xlane.f32.xlu0 %v893
        %v895 = vpop.xlane.xlu0 %894
        %v896 = vcvt.f32.s32 %v895
        %v897 = vcvt.f32.s32 %v891
        %v898 = vshll.u32 %v897, 16
        %v899 = vadd.s32 %v898, %v896
        %vm900 = vcmp.lt.s32.totalorder %v820, %v821
        %v901 = vsel %vm900, %v820, %v821
        %vm902 = vcmp.lt.s32.totalorder %v901, %v822
        %v903 = vsel %vm902, %v901, %v822
        %vm904 = vcmp.lt.s32.totalorder %v903, %v823
        %v905 = vsel %vm904, %v903, %v823
        %v906 = vand.u32 %v905, 65535
        %v907 = vshra.s32 %v905, 16
        %v908 = vcvt.s32.f32 %v906
        %v909 = vcvt.s32.f32 %v907
        %910 = vmin.xlane.f32.xlu0 %v909
        %v911 = vpop.xlane.xlu0 %910
        %vm912 = vcmp.eq.f32.partialorder %v909, %v911
        %v913 = vsel %vm912, %v908, inf
        %914 = vmin.xlane.f32.xlu0 %v913
        %v915 = vpop.xlane.xlu0 %914
        %v916 = vcvt.f32.s32 %v915
        %v917 = vcvt.f32.s32 %v911
        %v918 = vshll.u32 %v917, 16
        %v919 = vadd.s32 %v918, %v916
        %vm920 = vcmp.lt.s32.totalorder %v824, %v825
        %v921 = vsel %vm920, %v824, %v825
        %vm922 = vcmp.lt.s32.totalorder %v921, %v826
        %v923 = vsel %vm922, %v921, %v826
        %vm924 = vcmp.lt.s32.totalorder %v923, %v827
        %v925 = vsel %vm924, %v923, %v827
        %v926 = vand.u32 %v925, 65535
        %v927 = vshra.s32 %v925, 16
        %v928 = vcvt.s32.f32 %v926
        %v929 = vcvt.s32.f32 %v927
        %930 = vmin.xlane.f32.xlu0 %v929
        %v931 = vpop.xlane.xlu0 %930
        %vm932 = vcmp.eq.f32.partialorder %v929, %v931
        %v933 = vsel %vm932, %v928, inf
        %934 = vmin.xlane.f32.xlu0 %v933
        %v935 = vpop.xlane.xlu0 %934
        %v936 = vcvt.f32.s32 %v935
        %v937 = vcvt.f32.s32 %v931
        %v938 = vshll.u32 %v937, 16
        %v939 = vadd.s32 %v938, %v936
        %vm940 = vcmp.lt.s32.totalorder %v828, %v829
        %v941 = vsel %vm940, %v828, %v829
        %vm942 = vcmp.lt.s32.totalorder %v941, %v830
        %v943 = vsel %vm942, %v941, %v830
        %vm944 = vcmp.lt.s32.totalorder %v943, %v831
        %v945 = vsel %vm944, %v943, %v831
        %v946 = vand.u32 %v945, 65535
        %v947 = vshra.s32 %v945, 16
        %v948 = vcvt.s32.f32 %v946
        %v949 = vcvt.s32.f32 %v947
        %950 = vmin.xlane.f32.xlu0 %v949
        %v951 = vpop.xlane.xlu0 %950
        %vm952 = vcmp.eq.f32.partialorder %v949, %v951
        %v953 = vsel %vm952, %v948, inf
        %954 = vmin.xlane.f32.xlu0 %v953
        %v955 = vpop.xlane.xlu0 %954
        %v956 = vcvt.f32.s32 %v955
        %v957 = vcvt.f32.s32 %v951
        %v958 = vshll.u32 %v957, 16
        %v959 = vadd.s32 %v958, %v956
        %vm960 = vcmp.lt.s32.totalorder %v832, %v833
        %v961 = vsel %vm960, %v832, %v833
        %vm962 = vcmp.lt.s32.totalorder %v961, %v834
        %v963 = vsel %vm962, %v961, %v834
        %vm964 = vcmp.lt.s32.totalorder %v963, %v835
        %v965 = vsel %vm964, %v963, %v835
        %v966 = vand.u32 %v965, 65535
        %v967 = vshra.s32 %v965, 16
        %v968 = vcvt.s32.f32 %v966
        %v969 = vcvt.s32.f32 %v967
        %970 = vmin.xlane.f32.xlu0 %v969
        %v971 = vpop.xlane.xlu0 %970
        %vm972 = vcmp.eq.f32.partialorder %v969, %v971
        %v973 = vsel %vm972, %v968, inf
        %974 = vmin.xlane.f32.xlu0 %v973
        %v975 = vpop.xlane.xlu0 %974
        %v976 = vcvt.f32.s32 %v975
        %v977 = vcvt.f32.s32 %v971
        %v978 = vshll.u32 %v977, 16
        %v979 = vadd.s32 %v978, %v976
        %vm980 = vcmp.lt.s32.totalorder %v836, %v837
        %v981 = vsel %vm980, %v836, %v837
        %vm982 = vcmp.lt.s32.totalorder %v981, %v838
        %v983 = vsel %vm982, %v981, %v838
        %vm984 = vcmp.lt.s32.totalorder %v983, %v839
        %v985 = vsel %vm984, %v983, %v839
        %v986 = vand.u32 %v985, 65535
        %v987 = vshra.s32 %v985, 16
        %v988 = vcvt.s32.f32 %v986
        %v989 = vcvt.s32.f32 %v987
        %990 = vmin.xlane.f32.xlu0 %v989
        %v991 = vpop.xlane.xlu0 %990
        %vm992 = vcmp.eq.f32.partialorder %v989, %v991
        %v993 = vsel %vm992, %v988, inf
        %994 = vmin.xlane.f32.xlu0 %v993
        %v995 = vpop.xlane.xlu0 %994
        %v996 = vcvt.f32.s32 %v995
        %v997 = vcvt.f32.s32 %v991
        %v998 = vshll.u32 %v997, 16
        %v999 = vadd.s32 %v998, %v996
        %vm1000 = vcmp.lt.s32.totalorder %v840, %v841
        %v1001 = vsel %vm1000, %v840, %v841
        %vm1002 = vcmp.lt.s32.totalorder %v1001, %v842
        %v1003 = vsel %vm1002, %v1001, %v842
        %vm1004 = vcmp.lt.s32.totalorder %v1003, %v843
        %v1005 = vsel %vm1004, %v1003, %v843
        %v1006 = vand.u32 %v1005, 65535
        %v1007 = vshra.s32 %v1005, 16
        %v1008 = vcvt.s32.f32 %v1006
        %v1009 = vcvt.s32.f32 %v1007
        %1010 = vmin.xlane.f32.xlu0 %v1009
        %v1011 = vpop.xlane.xlu0 %1010
        %vm1012 = vcmp.eq.f32.partialorder %v1009, %v1011
        %v1013 = vsel %vm1012, %v1008, inf
        %1014 = vmin.xlane.f32.xlu0 %v1013
        %v1015 = vpop.xlane.xlu0 %1014
        %v1016 = vcvt.f32.s32 %v1015
        %v1017 = vcvt.f32.s32 %v1011
        %v1018 = vshll.u32 %v1017, 16
        %v1019 = vadd.s32 %v1018, %v1016
        %vm1020 = vcmp.lt.s32.totalorder %v844, %v845
        %v1021 = vsel %vm1020, %v844, %v845
        %vm1022 = vcmp.lt.s32.totalorder %v1021, %v846
        %v1023 = vsel %vm1022, %v1021, %v846
        %vm1024 = vcmp.lt.s32.totalorder %v1023, %v847
        %v1025 = vsel %vm1024, %v1023, %v847
        %v1026 = vand.u32 %v1025, 65535
        %v1027 = vshra.s32 %v1025, 16
        %v1028 = vcvt.s32.f32 %v1026
        %v1029 = vcvt.s32.f32 %v1027
        %1030 = vmin.xlane.f32.xlu0 %v1029
        %v1031 = vpop.xlane.xlu0 %1030
        %vm1032 = vcmp.eq.f32.partialorder %v1029, %v1031
        %v1033 = vsel %vm1032, %v1028, inf
        %1034 = vmin.xlane.f32.xlu0 %v1033
        %v1035 = vpop.xlane.xlu0 %1034
        %v1036 = vcvt.f32.s32 %v1035
        %v1037 = vcvt.f32.s32 %v1031
        %v1038 = vshll.u32 %v1037, 16
        %v1039 = vadd.s32 %v1038, %v1036
        %vm1040 = vcmp.lt.s32.totalorder %v848, %v849
        %v1041 = vsel %vm1040, %v848, %v849
        %vm1042 = vcmp.lt.s32.totalorder %v1041, %v850
        %v1043 = vsel %vm1042, %v1041, %v850
        %vm1044 = vcmp.lt.s32.totalorder %v1043, %v851
        %v1045 = vsel %vm1044, %v1043, %v851
        %v1046 = vand.u32 %v1045, 65535
        %v1047 = vshra.s32 %v1045, 16
        %v1048 = vcvt.s32.f32 %v1046
        %v1049 = vcvt.s32.f32 %v1047
        %1050 = vmin.xlane.f32.xlu0 %v1049
        %v1051 = vpop.xlane.xlu0 %1050
        %vm1052 = vcmp.eq.f32.partialorder %v1049, %v1051
        %v1053 = vsel %vm1052, %v1048, inf
        %1054 = vmin.xlane.f32.xlu0 %v1053
        %v1055 = vpop.xlane.xlu0 %1054
        %v1056 = vcvt.f32.s32 %v1055
        %v1057 = vcvt.f32.s32 %v1051
        %v1058 = vshll.u32 %v1057, 16
        %v1059 = vadd.s32 %v1058, %v1056
        %vm1060 = vcmp.lt.s32.totalorder %v852, %v853
        %v1061 = vsel %vm1060, %v852, %v853
        %vm1062 = vcmp.lt.s32.totalorder %v1061, %v854
        %v1063 = vsel %vm1062, %v1061, %v854
        %vm1064 = vcmp.lt.s32.totalorder %v1063, %v855
        %v1065 = vsel %vm1064, %v1063, %v855
        %v1066 = vand.u32 %v1065, 65535
        %v1067 = vshra.s32 %v1065, 16
        %v1068 = vcvt.s32.f32 %v1066
        %v1069 = vcvt.s32.f32 %v1067
        %1070 = vmin.xlane.f32.xlu0 %v1069
        %v1071 = vpop.xlane.xlu0 %1070
        %vm1072 = vcmp.eq.f32.partialorder %v1069, %v1071
        %v1073 = vsel %vm1072, %v1068, inf
        %1074 = vmin.xlane.f32.xlu0 %v1073
        %v1075 = vpop.xlane.xlu0 %1074
        %v1076 = vcvt.f32.s32 %v1075
        %v1077 = vcvt.f32.s32 %v1071
        %v1078 = vshll.u32 %v1077, 16
        %v1079 = vadd.s32 %v1078, %v1076
        %vm1080 = vcmp.lt.s32.totalorder %v856, %v857
        %v1081 = vsel %vm1080, %v856, %v857
        %vm1082 = vcmp.lt.s32.totalorder %v1081, %v858
        %v1083 = vsel %vm1082, %v1081, %v858
        %vm1084 = vcmp.lt.s32.totalorder %v1083, %v859
        %v1085 = vsel %vm1084, %v1083, %v859
        %v1086 = vand.u32 %v1085, 65535
        %v1087 = vshra.s32 %v1085, 16
        %v1088 = vcvt.s32.f32 %v1086
        %v1089 = vcvt.s32.f32 %v1087
        %1090 = vmin.xlane.f32.xlu0 %v1089
        %v1091 = vpop.xlane.xlu0 %1090
        %vm1092 = vcmp.eq.f32.partialorder %v1089, %v1091
        %v1093 = vsel %vm1092, %v1088, inf
        %1094 = vmin.xlane.f32.xlu0 %v1093
        %v1095 = vpop.xlane.xlu0 %1094
        %v1096 = vcvt.f32.s32 %v1095
        %v1097 = vcvt.f32.s32 %v1091
        %v1098 = vshll.u32 %v1097, 16
        %v1099 = vadd.s32 %v1098, %v1096
        %vm1100 = vcmp.lt.s32.totalorder %v860, %v861
        %v1101 = vsel %vm1100, %v860, %v861
        %vm1102 = vcmp.lt.s32.totalorder %v1101, %v862
        %v1103 = vsel %vm1102, %v1101, %v862
        %vm1104 = vcmp.lt.s32.totalorder %v1103, %v863
        %v1105 = vsel %vm1104, %v1103, %v863
        %v1106 = vand.u32 %v1105, 65535
        %v1107 = vshra.s32 %v1105, 16
        %v1108 = vcvt.s32.f32 %v1106
        %v1109 = vcvt.s32.f32 %v1107
        %1110 = vmin.xlane.f32.xlu0 %v1109
        %v1111 = vpop.xlane.xlu0 %1110
        %vm1112 = vcmp.eq.f32.partialorder %v1109, %v1111
        %v1113 = vsel %vm1112, %v1108, inf
        %1114 = vmin.xlane.f32.xlu0 %v1113
        %v1115 = vpop.xlane.xlu0 %1114
        %v1116 = vcvt.f32.s32 %v1115
        %v1117 = vcvt.f32.s32 %v1111
        %v1118 = vshll.u32 %v1117, 16
        %v1119 = vadd.s32 %v1118, %v1116
        %vm1120 = vcmp.lt.s32.totalorder %v864, %v865
        %v1121 = vsel %vm1120, %v864, %v865
        %vm1122 = vcmp.lt.s32.totalorder %v1121, %v866
        %v1123 = vsel %vm1122, %v1121, %v866
        %vm1124 = vcmp.lt.s32.totalorder %v1123, %v867
        %v1125 = vsel %vm1124, %v1123, %v867
        %v1126 = vand.u32 %v1125, 65535
        %v1127 = vshra.s32 %v1125, 16
        %v1128 = vcvt.s32.f32 %v1126
        %v1129 = vcvt.s32.f32 %v1127
        %1130 = vmin.xlane.f32.xlu0 %v1129
        %v1131 = vpop.xlane.xlu0 %1130
        %vm1132 = vcmp.eq.f32.partialorder %v1129, %v1131
        %v1133 = vsel %vm1132, %v1128, inf
        %1134 = vmin.xlane.f32.xlu0 %v1133
        %v1135 = vpop.xlane.xlu0 %1134
        %v1136 = vcvt.f32.s32 %v1135
        %v1137 = vcvt.f32.s32 %v1131
        %v1138 = vshll.u32 %v1137, 16
        %v1139 = vadd.s32 %v1138, %v1136
        %vm1140 = vcmp.lt.s32.totalorder %v868, %v869
        %v1141 = vsel %vm1140, %v868, %v869
        %vm1142 = vcmp.lt.s32.totalorder %v1141, %v870
        %v1143 = vsel %vm1142, %v1141, %v870
        %vm1144 = vcmp.lt.s32.totalorder %v1143, %v871
        %v1145 = vsel %vm1144, %v1143, %v871
        %v1146 = vand.u32 %v1145, 65535
        %v1147 = vshra.s32 %v1145, 16
        %v1148 = vcvt.s32.f32 %v1146
        %v1149 = vcvt.s32.f32 %v1147
        %1150 = vmin.xlane.f32.xlu0 %v1149
        %v1151 = vpop.xlane.xlu0 %1150
        %vm1152 = vcmp.eq.f32.partialorder %v1149, %v1151
        %v1153 = vsel %vm1152, %v1148, inf
        %1154 = vmin.xlane.f32.xlu0 %v1153
        %v1155 = vpop.xlane.xlu0 %1154
        %v1156 = vcvt.f32.s32 %v1155
        %v1157 = vcvt.f32.s32 %v1151
        %v1158 = vshll.u32 %v1157, 16
        %v1159 = vadd.s32 %v1158, %v1156
        %vm1160 = vcmp.lt.s32.totalorder %v872, %v873
        %v1161 = vsel %vm1160, %v872, %v873
        %vm1162 = vcmp.lt.s32.totalorder %v1161, %v874
        %v1163 = vsel %vm1162, %v1161, %v874
        %vm1164 = vcmp.lt.s32.totalorder %v1163, %v875
        %v1165 = vsel %vm1164, %v1163, %v875
        %v1166 = vand.u32 %v1165, 65535
        %v1167 = vshra.s32 %v1165, 16
        %v1168 = vcvt.s32.f32 %v1166
        %v1169 = vcvt.s32.f32 %v1167
        %1170 = vmin.xlane.f32.xlu0 %v1169
        %v1171 = vpop.xlane.xlu0 %1170
        %vm1172 = vcmp.eq.f32.partialorder %v1169, %v1171
        %v1173 = vsel %vm1172, %v1168, inf
        %1174 = vmin.xlane.f32.xlu0 %v1173
        %v1175 = vpop.xlane.xlu0 %1174
        %v1176 = vcvt.f32.s32 %v1175
        %v1177 = vcvt.f32.s32 %v1171
        %v1178 = vshll.u32 %v1177, 16
        %v1179 = vadd.s32 %v1178, %v1176
        %vm1180 = vcmp.lt.s32.totalorder %v876, %v877
        %v1181 = vsel %vm1180, %v876, %v877
        %vm1182 = vcmp.lt.s32.totalorder %v1181, %v878
        %v1183 = vsel %vm1182, %v1181, %v878
        %vm1184 = vcmp.lt.s32.totalorder %v1183, %v879
        %v1185 = vsel %vm1184, %v1183, %v879
        %v1186 = vand.u32 %v1185, 65535
        %v1187 = vshra.s32 %v1185, 16
        %v1188 = vcvt.s32.f32 %v1186
        %v1189 = vcvt.s32.f32 %v1187
        %1190 = vmin.xlane.f32.xlu0 %v1189
        %v1191 = vpop.xlane.xlu0 %1190
        %vm1192 = vcmp.eq.f32.partialorder %v1189, %v1191
        %v1193 = vsel %vm1192, %v1188, inf
        %1194 = vmin.xlane.f32.xlu0 %v1193
        %v1195 = vpop.xlane.xlu0 %1194
        %v1196 = vcvt.f32.s32 %v1195
        %v1197 = vcvt.f32.s32 %v1191
        %v1198 = vshll.u32 %v1197, 16
        %v1199 = vadd.s32 %v1198, %v1196
        %vm1200 = vcmp.gt.f32.partialorder %v671, -inf
        %vm1201 = vcmp.gt.f32.partialorder %v676, -inf
        %vm1202 = vcmp.gt.f32.partialorder %v681, -inf
        %vm1203 = vcmp.gt.f32.partialorder %v686, -inf
        %vm1204 = vcmp.gt.f32.partialorder %v691, -inf
        %vm1205 = vcmp.gt.f32.partialorder %v696, -inf
        %vm1206 = vcmp.gt.f32.partialorder %v701, -inf
        %vm1207 = vcmp.gt.f32.partialorder %v706, -inf
        %vm1208 = vcmp.gt.f32.partialorder %v711, -inf
        %vm1209 = vcmp.gt.f32.partialorder %v716, -inf
        %vm1210 = vcmp.gt.f32.partialorder %v721, -inf
        %vm1211 = vcmp.gt.f32.partialorder %v726, -inf
        %vm1212 = vcmp.gt.f32.partialorder %v731, -inf
        %vm1213 = vcmp.gt.f32.partialorder %v736, -inf
        %vm1214 = vcmp.gt.f32.partialorder %v741, -inf
        %vm1215 = vcmp.gt.f32.partialorder %v746, -inf
        %v1216 = vsel %vm1200, %v899, 0
        %v1217 = vsel %vm1201, %v919, 0
        %v1218 = vsel %vm1202, %v939, 0
        %v1219 = vsel %vm1203, %v959, 0
        %v1220 = vsel %vm1204, %v979, 0
        %v1221 = vsel %vm1205, %v999, 0
        %v1222 = vsel %vm1206, %v1019, 0
        %v1223 = vsel %vm1207, %v1039, 0
        %v1224 = vsel %vm1208, %v1059, 0
        %v1225 = vsel %vm1209, %v1079, 0
        %v1226 = vsel %vm1210, %v1099, 0
        %v1227 = vsel %vm1211, %v1119, 0
        %v1228 = vsel %vm1212, %v1139, 0
        %v1229 = vsel %vm1213, %v1159, 0
        %v1230 = vsel %vm1214, %v1179, 0
        %v1231 = vsel %vm1215, %v1199, 0
        %v1232 = vsel %vm1200, %v671, -inf
        %v1233 = vsel %vm1201, %v676, -inf
        %v1234 = vsel %vm1202, %v681, -inf
        %v1235 = vsel %vm1203, %v686, -inf
        %v1236 = vsel %vm1204, %v691, -inf
        %v1237 = vsel %vm1205, %v696, -inf
        %v1238 = vsel %vm1206, %v701, -inf
        %v1239 = vsel %vm1207, %v706, -inf
        %v1240 = vsel %vm1208, %v711, -inf
        %v1241 = vsel %vm1209, %v716, -inf
        %v1242 = vsel %vm1210, %v721, -inf
        %v1243 = vsel %vm1211, %v726, -inf
        %v1244 = vsel %vm1212, %v731, -inf
        %v1245 = vsel %vm1213, %v736, -inf
        %v1246 = vsel %vm1214, %v741, -inf
        %v1247 = vsel %vm1215, %v746, -inf
        %v1248 = vld [vmem:[%s1 + $0x20] sm:$0xff]
        %v1249 = vld [vmem:[%s1 + $0x28] sm:$0xff]
        %v1250 = vld [vmem:[%s1 + $0x30] sm:$0xff]
        %v1251 = vld [vmem:[%s1 + $0x38] sm:$0xff]
        %1252 = vmatprep.subr.mxu0 %v1249
        %1253 = vmatpush1.msra.mxu0 %v1248
        %1254 = vmatprep.subr.mxu0 0.0
        %1255 = vmatpush1.msra.mxu0 0.0
        %1256 = vmatprep.subr.mxu0 0.0
        %1257 = vmatpush1.msra.mxu0 0.0
        %1258 = vmatprep.subr.mxu0 0.0
        %1259 = vmatpush1.msra.mxu0 0.0
        %1260 = vmatprep.subr.mxu0 0.0
        %1261 = vmatpush1.msra.mxu0 0.0
        %1262 = vmatprep.subr.mxu0 0.0
        %1263 = vmatpush1.msra.mxu0 0.0
        %1264 = vmatprep.subr.mxu0 0.0
        %1265 = vmatpush1.msra.mxu0 0.0
        %1266 = vmatprep.subr.mxu0 0.0
        %1267 = vmatpush1.msra.mxu0 0.0
        %1268 = vmatprep.subr.mxu0 0.0
        %1269 = vmatpush1.msra.mxu0 0.0
        %1270 = vmatprep.subr.mxu0 0.0
        %1271 = vmatpush1.msra.mxu0 0.0
        %1272 = vmatprep.subr.mxu0 0.0
        %1273 = vmatpush1.msra.mxu0 0.0
        %1274 = vmatprep.subr.mxu0 0.0
        %1275 = vmatpush1.msra.mxu0 0.0
        %1276 = vmatprep.subr.mxu0 0.0
        %1277 = vmatpush1.msra.mxu0 0.0
        %1278 = vmatprep.subr.mxu0 0.0
        %1279 = vmatpush1.msra.mxu0 0.0
        %1280 = vmatprep.subr.mxu0 0.0
        %1281 = vmatpush1.msra.mxu0 0.0
        %1282 = vmatprep.subr.mxu0 0.0
        %1283 = vmatpush1.msra.mxu0 0.0
        %1284 = vmatprep.subr.mxu0 0.0
        %1285 = vmatpush1.msra.mxu0 0.0
        %1286 = vmatprep.subr.mxu0 0.0
        %1287 = vmatpush1.msra.mxu0 0.0
        %1288 = vmatprep.subr.mxu0 0.0
        %1289 = vmatpush1.msra.mxu0 0.0
        %1290 = vmatprep.subr.mxu0 0.0
        %1291 = vmatpush1.msra.mxu0 0.0
        %1292 = vmatprep.subr.mxu0 0.0
        %1293 = vmatpush1.msra.mxu0 0.0
        %1294 = vmatprep.subr.mxu0 0.0
        %1295 = vmatpush1.msra.mxu0 0.0
        %1296 = vmatprep.subr.mxu0 0.0
        %1297 = vmatpush1.msra.mxu0 0.0
        %1298 = vmatprep.subr.mxu0 0.0
        %1299 = vmatpush1.msra.mxu0 0.0
        %1300 = vmatprep.subr.mxu0 0.0
        %1301 = vmatpush1.msra.mxu0 0.0
        %1302 = vmatprep.subr.mxu0 0.0
        %1303 = vmatpush1.msra.mxu0 0.0
        %1304 = vmatprep.subr.mxu0 0.0
        %1305 = vmatpush1.msra.mxu0 0.0
        %1306 = vmatprep.subr.mxu0 0.0
        %1307 = vmatpush1.msra.mxu0 0.0
        %1308 = vmatprep.subr.mxu0 0.0
        %1309 = vmatpush1.msra.mxu0 0.0
        %1310 = vmatprep.subr.mxu0 0.0
        %1311 = vmatpush1.msra.mxu0 0.0
        %1312 = vmatprep.subr.mxu0 0.0
        %1313 = vmatpush1.msra.mxu0 0.0
        %1314 = vmatprep.subr.mxu0 0.0
        %1315 = vmatpush1.msra.mxu0 0.0
        %1316 = vmatprep.mubr.f32.mxu0 0.0
        %1317 = vmatmul.mubr.f32.gmra.mrb[0].mxu0 %v212
        %v1318 = vpop.f32.mrb[0].mxu0
        %v1319 = vadd.f32 0.0, %v1318
        %v1320 = vpop.f32.mrb[0].mxu0
        %v1321 = vadd.f32 0.0, %v1320
        %1322 = vmatprep.mubr.f32.mxu0 0.0
        %1323 = vmatmul.mubr.f32.gmra.mrb[0].mxu0 %v215
        %v1324 = vpop.f32.mrb[0].mxu0
        %v1325 = vadd.f32 0.0, %v1324
        %v1326 = vpop.f32.mrb[0].mxu0
        %v1327 = vadd.f32 0.0, %v1326
        %1328 = vmatprep.mubr.f32.mxu0 0.0
        %1329 = vmatmul.mubr.f32.gmra.mrb[0].mxu0 %v218
        %v1330 = vpop.f32.mrb[0].mxu0
        %v1331 = vadd.f32 0.0, %v1330
        %v1332 = vpop.f32.mrb[0].mxu0
        %v1333 = vadd.f32 0.0, %v1332
        %1334 = vmatprep.mubr.f32.mxu0 0.0
        %1335 = vmatmul.mubr.f32.gmra.mrb[0].mxu0 %v221
        %v1336 = vpop.f32.mrb[0].mxu0
        %v1337 = vadd.f32 0.0, %v1336
        %v1338 = vpop.f32.mrb[0].mxu0
        %v1339 = vadd.f32 0.0, %v1338
        %1340 = vmatprep.mubr.f32.mxu0 0.0
        %1341 = vmatmul.mubr.f32.gmra.mrb[0].mxu0 %v224
        %v1342 = vpop.f32.mrb[0].mxu0
        %v1343 = vadd.f32 0.0, %v1342
        %v1344 = vpop.f32.mrb[0].mxu0
        %v1345 = vadd.f32 0.0, %v1344
        %1346 = vmatprep.mubr.f32.mxu0 0.0
        %1347 = vmatmul.mubr.f32.gmra.mrb[0].mxu0 %v227
        %v1348 = vpop.f32.mrb[0].mxu0
        %v1349 = vadd.f32 0.0, %v1348
        %v1350 = vpop.f32.mrb[0].mxu0
        %v1351 = vadd.f32 0.0, %v1350
        %1352 = vmatprep.mubr.f32.mxu0 0.0
        %1353 = vmatmul.mubr.f32.gmra.mrb[0].mxu0 %v230
        %v1354 = vpop.f32.mrb[0].mxu0
        %v1355 = vadd.f32 0.0, %v1354
        %v1356 = vpop.f32.mrb[0].mxu0
        %v1357 = vadd.f32 0.0, %v1356
        %1358 = vmatprep.mubr.f32.mxu0 0.0
        %1359 = vmatmul.mubr.f32.gmra.mrb[0].mxu0 %v233
        %v1360 = vpop.f32.mrb[0].mxu0
        %v1361 = vadd.f32 0.0, %v1360
        %v1362 = vpop.f32.mrb[0].mxu0
        %v1363 = vadd.f32 0.0, %v1362
        %1364 = vmatprep.mubr.f32.mxu0 0.0
        %1365 = vmatmul.mubr.f32.gmra.mrb[0].mxu0 %v236
        %v1366 = vpop.f32.mrb[0].mxu0
        %v1367 = vadd.f32 0.0, %v1366
        %v1368 = vpop.f32.mrb[0].mxu0
        %v1369 = vadd.f32 0.0, %v1368
        %1370 = vmatprep.mubr.f32.mxu0 0.0
        %1371 = vmatmul.mubr.f32.gmra.mrb[0].mxu0 %v239
        %v1372 = vpop.f32.mrb[0].mxu0
        %v1373 = vadd.f32 0.0, %v1372
        %v1374 = vpop.f32.mrb[0].mxu0
        %v1375 = vadd.f32 0.0, %v1374
        %1376 = vmatprep.mubr.f32.mxu0 0.0
        %1377 = vmatmul.mubr.f32.gmra.mrb[0].mxu0 %v242
        %v1378 = vpop.f32.mrb[0].mxu0
        %v1379 = vadd.f32 0.0, %v1378
        %v1380 = vpop.f32.mrb[0].mxu0
        %v1381 = vadd.f32 0.0, %v1380
        %1382 = vmatprep.mubr.f32.mxu0 0.0
        %1383 = vmatmul.mubr.f32.gmra.mrb[0].mxu0 %v245
        %v1384 = vpop.f32.mrb[0].mxu0
        %v1385 = vadd.f32 0.0, %v1384
        %v1386 = vpop.f32.mrb[0].mxu0
        %v1387 = vadd.f32 0.0, %v1386
        %1388 = vmatprep.mubr.f32.mxu0 0.0
        %1389 = vmatmul.mubr.f32.gmra.mrb[0].mxu0 %v248
        %v1390 = vpop.f32.mrb[0].mxu0
        %v1391 = vadd.f32 0.0, %v1390
        %v1392 = vpop.f32.mrb[0].mxu0
        %v1393 = vadd.f32 0.0, %v1392
        %1394 = vmatprep.mubr.f32.mxu0 0.0
        %1395 = vmatmul.mubr.f32.gmra.mrb[0].mxu0 %v251
        %v1396 = vpop.f32.mrb[0].mxu0
        %v1397 = vadd.f32 0.0, %v1396
        %v1398 = vpop.f32.mrb[0].mxu0
        %v1399 = vadd.f32 0.0, %v1398
        %1400 = vmatprep.mubr.f32.mxu0 0.0
        %1401 = vmatmul.mubr.f32.gmra.mrb[0].mxu0 %v254
        %v1402 = vpop.f32.mrb[0].mxu0
        %v1403 = vadd.f32 0.0, %v1402
        %v1404 = vpop.f32.mrb[0].mxu0
        %v1405 = vadd.f32 0.0, %v1404
        %1406 = vmatprep.mubr.f32.mxu0 0.0
        %1407 = vmatmul.mubr.f32.gmra.mrb[0].mxu0 %v257
        %v1408 = vpop.f32.mrb[0].mxu0
        %v1409 = vadd.f32 0.0, %v1408
        %v1410 = vpop.f32.mrb[0].mxu0
        %v1411 = vadd.f32 0.0, %v1410
        %1412 = vdwg.mxu0
        %1413 = vmatprep.subr.mxu0 %v1251
        %1414 = vmatpush1.msra.mxu0 %v1250
        %1415 = vmatprep.subr.mxu0 0.0
        %1416 = vmatpush1.msra.mxu0 0.0
        %1417 = vmatprep.subr.mxu0 0.0
        %1418 = vmatpush1.msra.mxu0 0.0
        %1419 = vmatprep.subr.mxu0 0.0
        %1420 = vmatpush1.msra.mxu0 0.0
        %1421 = vmatprep.subr.mxu0 0.0
        %1422 = vmatpush1.msra.mxu0 0.0
        %1423 = vmatprep.subr.mxu0 0.0
        %1424 = vmatpush1.msra.mxu0 0.0
        %1425 = vmatprep.subr.mxu0 0.0
        %1426 = vmatpush1.msra.mxu0 0.0
        %1427 = vmatprep.subr.mxu0 0.0
        %1428 = vmatpush1.msra.mxu0 0.0
        %1429 = vmatprep.subr.mxu0 0.0
        %1430 = vmatpush1.msra.mxu0 0.0
        %1431 = vmatprep.subr.mxu0 0.0
        %1432 = vmatpush1.msra.mxu0 0.0
        %1433 = vmatprep.subr.mxu0 0.0
        %1434 = vmatpush1.msra.mxu0 0.0
        %1435 = vmatprep.subr.mxu0 0.0
        %1436 = vmatpush1.msra.mxu0 0.0
        %1437 = vmatprep.subr.mxu0 0.0
        %1438 = vmatpush1.msra.mxu0 0.0
        %1439 = vmatprep.subr.mxu0 0.0
        %1440 = vmatpush1.msra.mxu0 0.0
        %1441 = vmatprep.subr.mxu0 0.0
        %1442 = vmatpush1.msra.mxu0 0.0
        %1443 = vmatprep.subr.mxu0 0.0
        %1444 = vmatpush1.msra.mxu0 0.0
        %1445 = vmatprep.subr.mxu0 0.0
        %1446 = vmatpush1.msra.mxu0 0.0
        %1447 = vmatprep.subr.mxu0 0.0
        %1448 = vmatpush1.msra.mxu0 0.0
        %1449 = vmatprep.subr.mxu0 0.0
        %1450 = vmatpush1.msra.mxu0 0.0
        %1451 = vmatprep.subr.mxu0 0.0
        %1452 = vmatpush1.msra.mxu0 0.0
        %1453 = vmatprep.subr.mxu0 0.0
        %1454 = vmatpush1.msra.mxu0 0.0
        %1455 = vmatprep.subr.mxu0 0.0
        %1456 = vmatpush1.msra.mxu0 0.0
        %1457 = vmatprep.subr.mxu0 0.0
        %1458 = vmatpush1.msra.mxu0 0.0
        %1459 = vmatprep.subr.mxu0 0.0
        %1460 = vmatpush1.msra.mxu0 0.0
        %1461 = vmatprep.subr.mxu0 0.0
        %1462 = vmatpush1.msra.mxu0 0.0
        %1463 = vmatprep.subr.mxu0 0.0
        %1464 = vmatpush1.msra.mxu0 0.0
        %1465 = vmatprep.subr.mxu0 0.0
        %1466 = vmatpush1.msra.mxu0 0.0
        %1467 = vmatprep.subr.mxu0 0.0
        %1468 = vmatpush1.msra.mxu0 0.0
        %1469 = vmatprep.subr.mxu0 0.0
        %1470 = vmatpush1.msra.mxu0 0.0
        %1471 = vmatprep.subr.mxu0 0.0
        %1472 = vmatpush1.msra.mxu0 0.0
        %1473 = vmatprep.subr.mxu0 0.0
        %1474 = vmatpush1.msra.mxu0 0.0
        %1475 = vmatprep.subr.mxu0 0.0
        %1476 = vmatpush1.msra.mxu0 0.0
        %1477 = vmatprep.mubr.f32.mxu0 0.0
        %1478 = vmatmul.mubr.f32.gmra.mrb[0].mxu0 %v212
        %v1479 = vpop.f32.mrb[0].mxu0
        %v1480 = vadd.f32 0.0, %v1479
        %v1481 = vpop.f32.mrb[0].mxu0
        %v1482 = vadd.f32 0.0, %v1481
        %1483 = vmatprep.mubr.f32.mxu0 0.0
        %1484 = vmatmul.mubr.f32.gmra.mrb[0].mxu0 %v215
        %v1485 = vpop.f32.mrb[0].mxu0
        %v1486 = vadd.f32 0.0, %v1485
        %v1487 = vpop.f32.mrb[0].mxu0
        %v1488 = vadd.f32 0.0, %v1487
        %1489 = vmatprep.mubr.f32.mxu0 0.0
        %1490 = vmatmul.mubr.f32.gmra.mrb[0].mxu0 %v218
        %v1491 = vpop.f32.mrb[0].mxu0
        %v1492 = vadd.f32 0.0, %v1491
        %v1493 = vpop.f32.mrb[0].mxu0
        %v1494 = vadd.f32 0.0, %v1493
        %1495 = vmatprep.mubr.f32.mxu0 0.0
        %1496 = vmatmul.mubr.f32.gmra.mrb[0].mxu0 %v221
        %v1497 = vpop.f32.mrb[0].mxu0
        %v1498 = vadd.f32 0.0, %v1497
        %v1499 = vpop.f32.mrb[0].mxu0
        %v1500 = vadd.f32 0.0, %v1499
        %1501 = vmatprep.mubr.f32.mxu0 0.0
        %1502 = vmatmul.mubr.f32.gmra.mrb[0].mxu0 %v224
        %v1503 = vpop.f32.mrb[0].mxu0
        %v1504 = vadd.f32 0.0, %v1503
        %v1505 = vpop.f32.mrb[0].mxu0
        %v1506 = vadd.f32 0.0, %v1505
        %1507 = vmatprep.mubr.f32.mxu0 0.0
        %1508 = vmatmul.mubr.f32.gmra.mrb[0].mxu0 %v227
        %v1509 = vpop.f32.mrb[0].mxu0
        %v1510 = vadd.f32 0.0, %v1509
        %v1511 = vpop.f32.mrb[0].mxu0
        %v1512 = vadd.f32 0.0, %v1511
        %1513 = vmatprep.mubr.f32.mxu0 0.0
        %1514 = vmatmul.mubr.f32.gmra.mrb[0].mxu0 %v230
        %v1515 = vpop.f32.mrb[0].mxu0
        %v1516 = vadd.f32 0.0, %v1515
        %v1517 = vpop.f32.mrb[0].mxu0
        %v1518 = vadd.f32 0.0, %v1517
        %1519 = vmatprep.mubr.f32.mxu0 0.0
        %1520 = vmatmul.mubr.f32.gmra.mrb[0].mxu0 %v233
        %v1521 = vpop.f32.mrb[0].mxu0
        %v1522 = vadd.f32 0.0, %v1521
        %v1523 = vpop.f32.mrb[0].mxu0
        %v1524 = vadd.f32 0.0, %v1523
        %1525 = vmatprep.mubr.f32.mxu0 0.0
        %1526 = vmatmul.mubr.f32.gmra.mrb[0].mxu0 %v236
        %v1527 = vpop.f32.mrb[0].mxu0
        %v1528 = vadd.f32 0.0, %v1527
        %v1529 = vpop.f32.mrb[0].mxu0
        %v1530 = vadd.f32 0.0, %v1529
        %1531 = vmatprep.mubr.f32.mxu0 0.0
        %1532 = vmatmul.mubr.f32.gmra.mrb[0].mxu0 %v239
        %v1533 = vpop.f32.mrb[0].mxu0
        %v1534 = vadd.f32 0.0, %v1533
        %v1535 = vpop.f32.mrb[0].mxu0
        %v1536 = vadd.f32 0.0, %v1535
        %1537 = vmatprep.mubr.f32.mxu0 0.0
        %1538 = vmatmul.mubr.f32.gmra.mrb[0].mxu0 %v242
        %v1539 = vpop.f32.mrb[0].mxu0
        %v1540 = vadd.f32 0.0, %v1539
        %v1541 = vpop.f32.mrb[0].mxu0
        %v1542 = vadd.f32 0.0, %v1541
        %1543 = vmatprep.mubr.f32.mxu0 0.0
        %1544 = vmatmul.mubr.f32.gmra.mrb[0].mxu0 %v245
        %v1545 = vpop.f32.mrb[0].mxu0
        %v1546 = vadd.f32 0.0, %v1545
        %v1547 = vpop.f32.mrb[0].mxu0
        %v1548 = vadd.f32 0.0, %v1547
        %1549 = vmatprep.mubr.f32.mxu0 0.0
        %1550 = vmatmul.mubr.f32.gmra.mrb[0].mxu0 %v248
        %v1551 = vpop.f32.mrb[0].mxu0
        %v1552 = vadd.f32 0.0, %v1551
        %v1553 = vpop.f32.mrb[0].mxu0
        %v1554 = vadd.f32 0.0, %v1553
        %1555 = vmatprep.mubr.f32.mxu0 0.0
        %1556 = vmatmul.mubr.f32.gmra.mrb[0].mxu0 %v251
        %v1557 = vpop.f32.mrb[0].mxu0
        %v1558 = vadd.f32 0.0, %v1557
        %v1559 = vpop.f32.mrb[0].mxu0
        %v1560 = vadd.f32 0.0, %v1559
        %1561 = vmatprep.mubr.f32.mxu0 0.0
        %1562 = vmatmul.mubr.f32.gmra.mrb[0].mxu0 %v254
        %v1563 = vpop.f32.mrb[0].mxu0
        %v1564 = vadd.f32 0.0, %v1563
        %v1565 = vpop.f32.mrb[0].mxu0
        %v1566 = vadd.f32 0.0, %v1565
        %1567 = vmatprep.mubr.f32.mxu0 0.0
        %1568 = vmatmul.mubr.f32.gmra.mrb[0].mxu0 %v257
        %v1569 = vpop.f32.mrb[0].mxu0
        %v1570 = vadd.f32 0.0, %v1569
        %v1571 = vpop.f32.mrb[0].mxu0
        %v1572 = vadd.f32 0.0, %v1571
        %1573 = vdwg.mxu0
        %v1574 = vld [vmem:[%s2 + $0x4] sm:$0xf]
        %v1576 = vlaneseq
        %v1577 = vshrl.u32 %v1576, 7
        %v1578 = vsub.s32 0, %v1577
        %v1579 = vrot.slane %v1574, %v1578
        %v1580 = vlaneseq
        %v1581 = vshrl.u32 %v1580, 7
        %v1582 = vsub.s32 1, %v1581
        %v1583 = vrot.slane %v1574, %v1582
        %v1584 = vlaneseq
        %v1585 = vshrl.u32 %v1584, 7
        %v1586 = vsub.s32 2, %v1585
        %v1587 = vrot.slane %v1574, %v1586
        %v1588 = vlaneseq
        %v1589 = vshrl.u32 %v1588, 7
        %v1590 = vsub.s32 3, %v1589
        %v1591 = vrot.slane %v1574, %v1590
        %v1596 = vsub.f32 %v1319, %v1579
        %v1597 = vsub.f32 %v1321, %v1583
        %v1598 = vsub.f32 %v1480, %v1587
        %v1599 = vsub.f32 %v1482, %v1591
        %v1600 = vsub.f32 %v1325, %v1579
        %v1601 = vsub.f32 %v1327, %v1583
        %v1602 = vsub.f32 %v1486, %v1587
        %v1603 = vsub.f32 %v1488, %v1591
        %v1604 = vsub.f32 %v1331, %v1579
        %v1605 = vsub.f32 %v1333, %v1583
        %v1606 = vsub.f32 %v1492, %v1587
        %v1607 = vsub.f32 %v1494, %v1591
        %v1608 = vsub.f32 %v1337, %v1579
        %v1609 = vsub.f32 %v1339, %v1583
        %v1610 = vsub.f32 %v1498, %v1587
        %v1611 = vsub.f32 %v1500, %v1591
        %v1612 = vsub.f32 %v1343, %v1579
        %v1613 = vsub.f32 %v1345, %v1583
        %v1614 = vsub.f32 %v1504, %v1587
        %v1615 = vsub.f32 %v1506, %v1591
        %v1616 = vsub.f32 %v1349, %v1579
        %v1617 = vsub.f32 %v1351, %v1583
        %v1618 = vsub.f32 %v1510, %v1587
        %v1619 = vsub.f32 %v1512, %v1591
        %v1620 = vsub.f32 %v1355, %v1579
        %v1621 = vsub.f32 %v1357, %v1583
        %v1622 = vsub.f32 %v1516, %v1587
        %v1623 = vsub.f32 %v1518, %v1591
        %v1624 = vsub.f32 %v1361, %v1579
        %v1625 = vsub.f32 %v1363, %v1583
        %v1626 = vsub.f32 %v1522, %v1587
        %v1627 = vsub.f32 %v1524, %v1591
        %v1628 = vsub.f32 %v1367, %v1579
        %v1629 = vsub.f32 %v1369, %v1583
        %v1630 = vsub.f32 %v1528, %v1587
        %v1631 = vsub.f32 %v1530, %v1591
        %v1632 = vsub.f32 %v1373, %v1579
        %v1633 = vsub.f32 %v1375, %v1583
        %v1634 = vsub.f32 %v1534, %v1587
        %v1635 = vsub.f32 %v1536, %v1591
        %v1636 = vsub.f32 %v1379, %v1579
        %v1637 = vsub.f32 %v1381, %v1583
        %v1638 = vsub.f32 %v1540, %v1587
        %v1639 = vsub.f32 %v1542, %v1591
        %v1640 = vsub.f32 %v1385, %v1579
        %v1641 = vsub.f32 %v1387, %v1583
        %v1642 = vsub.f32 %v1546, %v1587
        %v1643 = vsub.f32 %v1548, %v1591
        %v1644 = vsub.f32 %v1391, %v1579
        %v1645 = vsub.f32 %v1393, %v1583
        %v1646 = vsub.f32 %v1552, %v1587
        %v1647 = vsub.f32 %v1554, %v1591
        %v1648 = vsub.f32 %v1397, %v1579
        %v1649 = vsub.f32 %v1399, %v1583
        %v1650 = vsub.f32 %v1558, %v1587
        %v1651 = vsub.f32 %v1560, %v1591
        %v1652 = vsub.f32 %v1403, %v1579
        %v1653 = vsub.f32 %v1405, %v1583
        %v1654 = vsub.f32 %v1564, %v1587
        %v1655 = vsub.f32 %v1566, %v1591
        %v1656 = vsub.f32 %v1409, %v1579
        %v1657 = vsub.f32 %v1411, %v1583
        %v1658 = vsub.f32 %v1570, %v1587
        %v1659 = vsub.f32 %v1572, %v1591
        %v1660 = vmax.f32 %v1596, %v1597
        %v1661 = vmax.f32 %v1660, %v1598
        %v1662 = vmax.f32 %v1661, %v1599
        %1663 = vmax.xlane.f32.xlu0 %v1662
        %v1664 = vpop.xlane.xlu0 %1663
        %v1665 = vmax.f32 %v1600, %v1601
        %v1666 = vmax.f32 %v1665, %v1602
        %v1667 = vmax.f32 %v1666, %v1603
        %1668 = vmax.xlane.f32.xlu0 %v1667
        %v1669 = vpop.xlane.xlu0 %1668
        %v1670 = vmax.f32 %v1604, %v1605
        %v1671 = vmax.f32 %v1670, %v1606
        %v1672 = vmax.f32 %v1671, %v1607
        %1673 = vmax.xlane.f32.xlu0 %v1672
        %v1674 = vpop.xlane.xlu0 %1673
        %v1675 = vmax.f32 %v1608, %v1609
        %v1676 = vmax.f32 %v1675, %v1610
        %v1677 = vmax.f32 %v1676, %v1611
        %1678 = vmax.xlane.f32.xlu0 %v1677
        %v1679 = vpop.xlane.xlu0 %1678
        %v1680 = vmax.f32 %v1612, %v1613
        %v1681 = vmax.f32 %v1680, %v1614
        %v1682 = vmax.f32 %v1681, %v1615
        %1683 = vmax.xlane.f32.xlu0 %v1682
        %v1684 = vpop.xlane.xlu0 %1683
        %v1685 = vmax.f32 %v1616, %v1617
        %v1686 = vmax.f32 %v1685, %v1618
        %v1687 = vmax.f32 %v1686, %v1619
        %1688 = vmax.xlane.f32.xlu0 %v1687
        %v1689 = vpop.xlane.xlu0 %1688
        %v1690 = vmax.f32 %v1620, %v1621
        %v1691 = vmax.f32 %v1690, %v1622
        %v1692 = vmax.f32 %v1691, %v1623
        %1693 = vmax.xlane.f32.xlu0 %v1692
        %v1694 = vpop.xlane.xlu0 %1693
        %v1695 = vmax.f32 %v1624, %v1625
        %v1696 = vmax.f32 %v1695, %v1626
        %v1697 = vmax.f32 %v1696, %v1627
        %1698 = vmax.xlane.f32.xlu0 %v1697
        %v1699 = vpop.xlane.xlu0 %1698
        %v1700 = vmax.f32 %v1628, %v1629
        %v1701 = vmax.f32 %v1700, %v1630
        %v1702 = vmax.f32 %v1701, %v1631
        %1703 = vmax.xlane.f32.xlu0 %v1702
        %v1704 = vpop.xlane.xlu0 %1703
        %v1705 = vmax.f32 %v1632, %v1633
        %v1706 = vmax.f32 %v1705, %v1634
        %v1707 = vmax.f32 %v1706, %v1635
        %1708 = vmax.xlane.f32.xlu0 %v1707
        %v1709 = vpop.xlane.xlu0 %1708
        %v1710 = vmax.f32 %v1636, %v1637
        %v1711 = vmax.f32 %v1710, %v1638
        %v1712 = vmax.f32 %v1711, %v1639
        %1713 = vmax.xlane.f32.xlu0 %v1712
        %v1714 = vpop.xlane.xlu0 %1713
        %v1715 = vmax.f32 %v1640, %v1641
        %v1716 = vmax.f32 %v1715, %v1642
        %v1717 = vmax.f32 %v1716, %v1643
        %1718 = vmax.xlane.f32.xlu0 %v1717
        %v1719 = vpop.xlane.xlu0 %1718
        %v1720 = vmax.f32 %v1644, %v1645
        %v1721 = vmax.f32 %v1720, %v1646
        %v1722 = vmax.f32 %v1721, %v1647
        %1723 = vmax.xlane.f32.xlu0 %v1722
        %v1724 = vpop.xlane.xlu0 %1723
        %v1725 = vmax.f32 %v1648, %v1649
        %v1726 = vmax.f32 %v1725, %v1650
        %v1727 = vmax.f32 %v1726, %v1651
        %1728 = vmax.xlane.f32.xlu0 %v1727
        %v1729 = vpop.xlane.xlu0 %1728
        %v1730 = vmax.f32 %v1652, %v1653
        %v1731 = vmax.f32 %v1730, %v1654
        %v1732 = vmax.f32 %v1731, %v1655
        %1733 = vmax.xlane.f32.xlu0 %v1732
        %v1734 = vpop.xlane.xlu0 %1733
        %v1735 = vmax.f32 %v1656, %v1657
        %v1736 = vmax.f32 %v1735, %v1658
        %v1737 = vmax.f32 %v1736, %v1659
        %1738 = vmax.xlane.f32.xlu0 %v1737
        %v1739 = vpop.xlane.xlu0 %1738
        %vm1740 = vcmp.eq.f32.partialorder %v1596, %v1664
        %vm1741 = vcmp.eq.f32.partialorder %v1597, %v1664
        %vm1742 = vcmp.eq.f32.partialorder %v1598, %v1664
        %vm1743 = vcmp.eq.f32.partialorder %v1599, %v1664
        %vm1744 = vcmp.eq.f32.partialorder %v1600, %v1669
        %vm1745 = vcmp.eq.f32.partialorder %v1601, %v1669
        %vm1746 = vcmp.eq.f32.partialorder %v1602, %v1669
        %vm1747 = vcmp.eq.f32.partialorder %v1603, %v1669
        %vm1748 = vcmp.eq.f32.partialorder %v1604, %v1674
        %vm1749 = vcmp.eq.f32.partialorder %v1605, %v1674
        %vm1750 = vcmp.eq.f32.partialorder %v1606, %v1674
        %vm1751 = vcmp.eq.f32.partialorder %v1607, %v1674
        %vm1752 = vcmp.eq.f32.partialorder %v1608, %v1679
        %vm1753 = vcmp.eq.f32.partialorder %v1609, %v1679
        %vm1754 = vcmp.eq.f32.partialorder %v1610, %v1679
        %vm1755 = vcmp.eq.f32.partialorder %v1611, %v1679
        %vm1756 = vcmp.eq.f32.partialorder %v1612, %v1684
        %vm1757 = vcmp.eq.f32.partialorder %v1613, %v1684
        %vm1758 = vcmp.eq.f32.partialorder %v1614, %v1684
        %vm1759 = vcmp.eq.f32.partialorder %v1615, %v1684
        %vm1760 = vcmp.eq.f32.partialorder %v1616, %v1689
        %vm1761 = vcmp.eq.f32.partialorder %v1617, %v1689
        %vm1762 = vcmp.eq.f32.partialorder %v1618, %v1689
        %vm1763 = vcmp.eq.f32.partialorder %v1619, %v1689
        %vm1764 = vcmp.eq.f32.partialorder %v1620, %v1694
        %vm1765 = vcmp.eq.f32.partialorder %v1621, %v1694
        %vm1766 = vcmp.eq.f32.partialorder %v1622, %v1694
        %vm1767 = vcmp.eq.f32.partialorder %v1623, %v1694
        %vm1768 = vcmp.eq.f32.partialorder %v1624, %v1699
        %vm1769 = vcmp.eq.f32.partialorder %v1625, %v1699
        %vm1770 = vcmp.eq.f32.partialorder %v1626, %v1699
        %vm1771 = vcmp.eq.f32.partialorder %v1627, %v1699
        %vm1772 = vcmp.eq.f32.partialorder %v1628, %v1704
        %vm1773 = vcmp.eq.f32.partialorder %v1629, %v1704
        %vm1774 = vcmp.eq.f32.partialorder %v1630, %v1704
        %vm1775 = vcmp.eq.f32.partialorder %v1631, %v1704
        %vm1776 = vcmp.eq.f32.partialorder %v1632, %v1709
        %vm1777 = vcmp.eq.f32.partialorder %v1633, %v1709
        %vm1778 = vcmp.eq.f32.partialorder %v1634, %v1709
        %vm1779 = vcmp.eq.f32.partialorder %v1635, %v1709
        %vm1780 = vcmp.eq.f32.partialorder %v1636, %v1714
        %vm1781 = vcmp.eq.f32.partialorder %v1637, %v1714
        %vm1782 = vcmp.eq.f32.partialorder %v1638, %v1714
        %vm1783 = vcmp.eq.f32.partialorder %v1639, %v1714
        %vm1784 = vcmp.eq.f32.partialorder %v1640, %v1719
        %vm1785 = vcmp.eq.f32.partialorder %v1641, %v1719
        %vm1786 = vcmp.eq.f32.partialorder %v1642, %v1719
        %vm1787 = vcmp.eq.f32.partialorder %v1643, %v1719
        %vm1788 = vcmp.eq.f32.partialorder %v1644, %v1724
        %vm1789 = vcmp.eq.f32.partialorder %v1645, %v1724
        %vm1790 = vcmp.eq.f32.partialorder %v1646, %v1724
        %vm1791 = vcmp.eq.f32.partialorder %v1647, %v1724
        %vm1792 = vcmp.eq.f32.partialorder %v1648, %v1729
        %vm1793 = vcmp.eq.f32.partialorder %v1649, %v1729
        %vm1794 = vcmp.eq.f32.partialorder %v1650, %v1729
        %vm1795 = vcmp.eq.f32.partialorder %v1651, %v1729
        %vm1796 = vcmp.eq.f32.partialorder %v1652, %v1734
        %vm1797 = vcmp.eq.f32.partialorder %v1653, %v1734
        %vm1798 = vcmp.eq.f32.partialorder %v1654, %v1734
        %vm1799 = vcmp.eq.f32.partialorder %v1655, %v1734
        %vm1800 = vcmp.eq.f32.partialorder %v1656, %v1739
        %vm1801 = vcmp.eq.f32.partialorder %v1657, %v1739
        %vm1802 = vcmp.eq.f32.partialorder %v1658, %v1739
        %vm1803 = vcmp.eq.f32.partialorder %v1659, %v1739
        %v1804 = vsel %vm1740, %v748, 512
        %v1805 = vsel %vm1741, %v749, 512
        %v1806 = vsel %vm1742, %v750, 512
        %v1807 = vsel %vm1743, %v751, 512
        %v1808 = vsel %vm1744, %v748, 512
        %v1809 = vsel %vm1745, %v749, 512
        %v1810 = vsel %vm1746, %v750, 512
        %v1811 = vsel %vm1747, %v751, 512
        %v1812 = vsel %vm1748, %v748, 512
        %v1813 = vsel %vm1749, %v749, 512
        %v1814 = vsel %vm1750, %v750, 512
        %v1815 = vsel %vm1751, %v751, 512
        %v1816 = vsel %vm1752, %v748, 512
        %v1817 = vsel %vm1753, %v749, 512
        %v1818 = vsel %vm1754, %v750, 512
        %v1819 = vsel %vm1755, %v751, 512
        %v1820 = vsel %vm1756, %v748, 512
        %v1821 = vsel %vm1757, %v749, 512
        %v1822 = vsel %vm1758, %v750, 512
        %v1823 = vsel %vm1759, %v751, 512
        %v1824 = vsel %vm1760, %v748, 512
        %v1825 = vsel %vm1761, %v749, 512
        %v1826 = vsel %vm1762, %v750, 512
        %v1827 = vsel %vm1763, %v751, 512
        %v1828 = vsel %vm1764, %v748, 512
        %v1829 = vsel %vm1765, %v749, 512
        %v1830 = vsel %vm1766, %v750, 512
        %v1831 = vsel %vm1767, %v751, 512
        %v1832 = vsel %vm1768, %v748, 512
        %v1833 = vsel %vm1769, %v749, 512
        %v1834 = vsel %vm1770, %v750, 512
        %v1835 = vsel %vm1771, %v751, 512
        %v1836 = vsel %vm1772, %v748, 512
        %v1837 = vsel %vm1773, %v749, 512
        %v1838 = vsel %vm1774, %v750, 512
        %v1839 = vsel %vm1775, %v751, 512
        %v1840 = vsel %vm1776, %v748, 512
        %v1841 = vsel %vm1777, %v749, 512
        %v1842 = vsel %vm1778, %v750, 512
        %v1843 = vsel %vm1779, %v751, 512
        %v1844 = vsel %vm1780, %v748, 512
        %v1845 = vsel %vm1781, %v749, 512
        %v1846 = vsel %vm1782, %v750, 512
        %v1847 = vsel %vm1783, %v751, 512
        %v1848 = vsel %vm1784, %v748, 512
        %v1849 = vsel %vm1785, %v749, 512
        %v1850 = vsel %vm1786, %v750, 512
        %v1851 = vsel %vm1787, %v751, 512
        %v1852 = vsel %vm1788, %v748, 512
        %v1853 = vsel %vm1789, %v749, 512
        %v1854 = vsel %vm1790, %v750, 512
        %v1855 = vsel %vm1791, %v751, 512
        %v1856 = vsel %vm1792, %v748, 512
        %v1857 = vsel %vm1793, %v749, 512
        %v1858 = vsel %vm1794, %v750, 512
        %v1859 = vsel %vm1795, %v751, 512
        %v1860 = vsel %vm1796, %v748, 512
        %v1861 = vsel %vm1797, %v749, 512
        %v1862 = vsel %vm1798, %v750, 512
        %v1863 = vsel %vm1799, %v751, 512
        %v1864 = vsel %vm1800, %v748, 512
        %v1865 = vsel %vm1801, %v749, 512
        %v1866 = vsel %vm1802, %v750, 512
        %v1867 = vsel %vm1803, %v751, 512
        %vm1868 = vcmp.lt.s32.totalorder %v1804, %v1805
        %v1869 = vsel %vm1868, %v1804, %v1805
        %vm1870 = vcmp.lt.s32.totalorder %v1869, %v1806
        %v1871 = vsel %vm1870, %v1869, %v1806
        %vm1872 = vcmp.lt.s32.totalorder %v1871, %v1807
        %v1873 = vsel %vm1872, %v1871, %v1807
        %v1874 = vand.u32 %v1873, 65535
        %v1875 = vshra.s32 %v1873, 16
        %v1876 = vcvt.s32.f32 %v1874
        %v1877 = vcvt.s32.f32 %v1875
        %1878 = vmin.xlane.f32.xlu0 %v1877
        %v1879 = vpop.xlane.xlu0 %1878
        %vm1880 = vcmp.eq.f32.partialorder %v1877, %v1879
        %v1881 = vsel %vm1880, %v1876, inf
        %1882 = vmin.xlane.f32.xlu0 %v1881
        %v1883 = vpop.xlane.xlu0 %1882
        %v1884 = vcvt.f32.s32 %v1883
        %v1885 = vcvt.f32.s32 %v1879
        %v1886 = vshll.u32 %v1885, 16
        %v1887 = vadd.s32 %v1886, %v1884
        %vm1888 = vcmp.lt.s32.totalorder %v1808, %v1809
        %v1889 = vsel %vm1888, %v1808, %v1809
        %vm1890 = vcmp.lt.s32.totalorder %v1889, %v1810
        %v1891 = vsel %vm1890, %v1889, %v1810
        %vm1892 = vcmp.lt.s32.totalorder %v1891, %v1811
        %v1893 = vsel %vm1892, %v1891, %v1811
        %v1894 = vand.u32 %v1893, 65535
        %v1895 = vshra.s32 %v1893, 16
        %v1896 = vcvt.s32.f32 %v1894
        %v1897 = vcvt.s32.f32 %v1895
        %1898 = vmin.xlane.f32.xlu0 %v1897
        %v1899 = vpop.xlane.xlu0 %1898
        %vm1900 = vcmp.eq.f32.partialorder %v1897, %v1899
        %v1901 = vsel %vm1900, %v1896, inf
        %1902 = vmin.xlane.f32.xlu0 %v1901
        %v1903 = vpop.xlane.xlu0 %1902
        %v1904 = vcvt.f32.s32 %v1903
        %v1905 = vcvt.f32.s32 %v1899
        %v1906 = vshll.u32 %v1905, 16
        %v1907 = vadd.s32 %v1906, %v1904
        %vm1908 = vcmp.lt.s32.totalorder %v1812, %v1813
        %v1909 = vsel %vm1908, %v1812, %v1813
        %vm1910 = vcmp.lt.s32.totalorder %v1909, %v1814
        %v1911 = vsel %vm1910, %v1909, %v1814
        %vm1912 = vcmp.lt.s32.totalorder %v1911, %v1815
        %v1913 = vsel %vm1912, %v1911, %v1815
        %v1914 = vand.u32 %v1913, 65535
        %v1915 = vshra.s32 %v1913, 16
        %v1916 = vcvt.s32.f32 %v1914
        %v1917 = vcvt.s32.f32 %v1915
        %1918 = vmin.xlane.f32.xlu0 %v1917
        %v1919 = vpop.xlane.xlu0 %1918
        %vm1920 = vcmp.eq.f32.partialorder %v1917, %v1919
        %v1921 = vsel %vm1920, %v1916, inf
        %1922 = vmin.xlane.f32.xlu0 %v1921
        %v1923 = vpop.xlane.xlu0 %1922
        %v1924 = vcvt.f32.s32 %v1923
        %v1925 = vcvt.f32.s32 %v1919
        %v1926 = vshll.u32 %v1925, 16
        %v1927 = vadd.s32 %v1926, %v1924
        %vm1928 = vcmp.lt.s32.totalorder %v1816, %v1817
        %v1929 = vsel %vm1928, %v1816, %v1817
        %vm1930 = vcmp.lt.s32.totalorder %v1929, %v1818
        %v1931 = vsel %vm1930, %v1929, %v1818
        %vm1932 = vcmp.lt.s32.totalorder %v1931, %v1819
        %v1933 = vsel %vm1932, %v1931, %v1819
        %v1934 = vand.u32 %v1933, 65535
        %v1935 = vshra.s32 %v1933, 16
        %v1936 = vcvt.s32.f32 %v1934
        %v1937 = vcvt.s32.f32 %v1935
        %1938 = vmin.xlane.f32.xlu0 %v1937
        %v1939 = vpop.xlane.xlu0 %1938
        %vm1940 = vcmp.eq.f32.partialorder %v1937, %v1939
        %v1941 = vsel %vm1940, %v1936, inf
        %1942 = vmin.xlane.f32.xlu0 %v1941
        %v1943 = vpop.xlane.xlu0 %1942
        %v1944 = vcvt.f32.s32 %v1943
        %v1945 = vcvt.f32.s32 %v1939
        %v1946 = vshll.u32 %v1945, 16
        %v1947 = vadd.s32 %v1946, %v1944
        %vm1948 = vcmp.lt.s32.totalorder %v1820, %v1821
        %v1949 = vsel %vm1948, %v1820, %v1821
        %vm1950 = vcmp.lt.s32.totalorder %v1949, %v1822
        %v1951 = vsel %vm1950, %v1949, %v1822
        %vm1952 = vcmp.lt.s32.totalorder %v1951, %v1823
        %v1953 = vsel %vm1952, %v1951, %v1823
        %v1954 = vand.u32 %v1953, 65535
        %v1955 = vshra.s32 %v1953, 16
        %v1956 = vcvt.s32.f32 %v1954
        %v1957 = vcvt.s32.f32 %v1955
        %1958 = vmin.xlane.f32.xlu0 %v1957
        %v1959 = vpop.xlane.xlu0 %1958
        %vm1960 = vcmp.eq.f32.partialorder %v1957, %v1959
        %v1961 = vsel %vm1960, %v1956, inf
        %1962 = vmin.xlane.f32.xlu0 %v1961
        %v1963 = vpop.xlane.xlu0 %1962
        %v1964 = vcvt.f32.s32 %v1963
        %v1965 = vcvt.f32.s32 %v1959
        %v1966 = vshll.u32 %v1965, 16
        %v1967 = vadd.s32 %v1966, %v1964
        %vm1968 = vcmp.lt.s32.totalorder %v1824, %v1825
        %v1969 = vsel %vm1968, %v1824, %v1825
        %vm1970 = vcmp.lt.s32.totalorder %v1969, %v1826
        %v1971 = vsel %vm1970, %v1969, %v1826
        %vm1972 = vcmp.lt.s32.totalorder %v1971, %v1827
        %v1973 = vsel %vm1972, %v1971, %v1827
        %v1974 = vand.u32 %v1973, 65535
        %v1975 = vshra.s32 %v1973, 16
        %v1976 = vcvt.s32.f32 %v1974
        %v1977 = vcvt.s32.f32 %v1975
        %1978 = vmin.xlane.f32.xlu0 %v1977
        %v1979 = vpop.xlane.xlu0 %1978
        %vm1980 = vcmp.eq.f32.partialorder %v1977, %v1979
        %v1981 = vsel %vm1980, %v1976, inf
        %1982 = vmin.xlane.f32.xlu0 %v1981
        %v1983 = vpop.xlane.xlu0 %1982
        %v1984 = vcvt.f32.s32 %v1983
        %v1985 = vcvt.f32.s32 %v1979
        %v1986 = vshll.u32 %v1985, 16
        %v1987 = vadd.s32 %v1986, %v1984
        %vm1988 = vcmp.lt.s32.totalorder %v1828, %v1829
        %v1989 = vsel %vm1988, %v1828, %v1829
        %vm1990 = vcmp.lt.s32.totalorder %v1989, %v1830
        %v1991 = vsel %vm1990, %v1989, %v1830
        %vm1992 = vcmp.lt.s32.totalorder %v1991, %v1831
        %v1993 = vsel %vm1992, %v1991, %v1831
        %v1994 = vand.u32 %v1993, 65535
        %v1995 = vshra.s32 %v1993, 16
        %v1996 = vcvt.s32.f32 %v1994
        %v1997 = vcvt.s32.f32 %v1995
        %1998 = vmin.xlane.f32.xlu0 %v1997
        %v1999 = vpop.xlane.xlu0 %1998
        %vm2000 = vcmp.eq.f32.partialorder %v1997, %v1999
        %v2001 = vsel %vm2000, %v1996, inf
        %2002 = vmin.xlane.f32.xlu0 %v2001
        %v2003 = vpop.xlane.xlu0 %2002
        %v2004 = vcvt.f32.s32 %v2003
        %v2005 = vcvt.f32.s32 %v1999
        %v2006 = vshll.u32 %v2005, 16
        %v2007 = vadd.s32 %v2006, %v2004
        %vm2008 = vcmp.lt.s32.totalorder %v1832, %v1833
        %v2009 = vsel %vm2008, %v1832, %v1833
        %vm2010 = vcmp.lt.s32.totalorder %v2009, %v1834
        %v2011 = vsel %vm2010, %v2009, %v1834
        %vm2012 = vcmp.lt.s32.totalorder %v2011, %v1835
        %v2013 = vsel %vm2012, %v2011, %v1835
        %v2014 = vand.u32 %v2013, 65535
        %v2015 = vshra.s32 %v2013, 16
        %v2016 = vcvt.s32.f32 %v2014
        %v2017 = vcvt.s32.f32 %v2015
        %2018 = vmin.xlane.f32.xlu0 %v2017
        %v2019 = vpop.xlane.xlu0 %2018
        %vm2020 = vcmp.eq.f32.partialorder %v2017, %v2019
        %v2021 = vsel %vm2020, %v2016, inf
        %2022 = vmin.xlane.f32.xlu0 %v2021
        %v2023 = vpop.xlane.xlu0 %2022
        %v2024 = vcvt.f32.s32 %v2023
        %v2025 = vcvt.f32.s32 %v2019
        %v2026 = vshll.u32 %v2025, 16
        %v2027 = vadd.s32 %v2026, %v2024
        %vm2028 = vcmp.lt.s32.totalorder %v1836, %v1837
        %v2029 = vsel %vm2028, %v1836, %v1837
        %vm2030 = vcmp.lt.s32.totalorder %v2029, %v1838
        %v2031 = vsel %vm2030, %v2029, %v1838
        %vm2032 = vcmp.lt.s32.totalorder %v2031, %v1839
        %v2033 = vsel %vm2032, %v2031, %v1839
        %v2034 = vand.u32 %v2033, 65535
        %v2035 = vshra.s32 %v2033, 16
        %v2036 = vcvt.s32.f32 %v2034
        %v2037 = vcvt.s32.f32 %v2035
        %2038 = vmin.xlane.f32.xlu0 %v2037
        %v2039 = vpop.xlane.xlu0 %2038
        %vm2040 = vcmp.eq.f32.partialorder %v2037, %v2039
        %v2041 = vsel %vm2040, %v2036, inf
        %2042 = vmin.xlane.f32.xlu0 %v2041
        %v2043 = vpop.xlane.xlu0 %2042
        %v2044 = vcvt.f32.s32 %v2043
        %v2045 = vcvt.f32.s32 %v2039
        %v2046 = vshll.u32 %v2045, 16
        %v2047 = vadd.s32 %v2046, %v2044
        %vm2048 = vcmp.lt.s32.totalorder %v1840, %v1841
        %v2049 = vsel %vm2048, %v1840, %v1841
        %vm2050 = vcmp.lt.s32.totalorder %v2049, %v1842
        %v2051 = vsel %vm2050, %v2049, %v1842
        %vm2052 = vcmp.lt.s32.totalorder %v2051, %v1843
        %v2053 = vsel %vm2052, %v2051, %v1843
        %v2054 = vand.u32 %v2053, 65535
        %v2055 = vshra.s32 %v2053, 16
        %v2056 = vcvt.s32.f32 %v2054
        %v2057 = vcvt.s32.f32 %v2055
        %2058 = vmin.xlane.f32.xlu0 %v2057
        %v2059 = vpop.xlane.xlu0 %2058
        %vm2060 = vcmp.eq.f32.partialorder %v2057, %v2059
        %v2061 = vsel %vm2060, %v2056, inf
        %2062 = vmin.xlane.f32.xlu0 %v2061
        %v2063 = vpop.xlane.xlu0 %2062
        %v2064 = vcvt.f32.s32 %v2063
        %v2065 = vcvt.f32.s32 %v2059
        %v2066 = vshll.u32 %v2065, 16
        %v2067 = vadd.s32 %v2066, %v2064
        %vm2068 = vcmp.lt.s32.totalorder %v1844, %v1845
        %v2069 = vsel %vm2068, %v1844, %v1845
        %vm2070 = vcmp.lt.s32.totalorder %v2069, %v1846
        %v2071 = vsel %vm2070, %v2069, %v1846
        %vm2072 = vcmp.lt.s32.totalorder %v2071, %v1847
        %v2073 = vsel %vm2072, %v2071, %v1847
        %v2074 = vand.u32 %v2073, 65535
        %v2075 = vshra.s32 %v2073, 16
        %v2076 = vcvt.s32.f32 %v2074
        %v2077 = vcvt.s32.f32 %v2075
        %2078 = vmin.xlane.f32.xlu0 %v2077
        %v2079 = vpop.xlane.xlu0 %2078
        %vm2080 = vcmp.eq.f32.partialorder %v2077, %v2079
        %v2081 = vsel %vm2080, %v2076, inf
        %2082 = vmin.xlane.f32.xlu0 %v2081
        %v2083 = vpop.xlane.xlu0 %2082
        %v2084 = vcvt.f32.s32 %v2083
        %v2085 = vcvt.f32.s32 %v2079
        %v2086 = vshll.u32 %v2085, 16
        %v2087 = vadd.s32 %v2086, %v2084
        %vm2088 = vcmp.lt.s32.totalorder %v1848, %v1849
        %v2089 = vsel %vm2088, %v1848, %v1849
        %vm2090 = vcmp.lt.s32.totalorder %v2089, %v1850
        %v2091 = vsel %vm2090, %v2089, %v1850
        %vm2092 = vcmp.lt.s32.totalorder %v2091, %v1851
        %v2093 = vsel %vm2092, %v2091, %v1851
        %v2094 = vand.u32 %v2093, 65535
        %v2095 = vshra.s32 %v2093, 16
        %v2096 = vcvt.s32.f32 %v2094
        %v2097 = vcvt.s32.f32 %v2095
        %2098 = vmin.xlane.f32.xlu0 %v2097
        %v2099 = vpop.xlane.xlu0 %2098
        %vm2100 = vcmp.eq.f32.partialorder %v2097, %v2099
        %v2101 = vsel %vm2100, %v2096, inf
        %2102 = vmin.xlane.f32.xlu0 %v2101
        %v2103 = vpop.xlane.xlu0 %2102
        %v2104 = vcvt.f32.s32 %v2103
        %v2105 = vcvt.f32.s32 %v2099
        %v2106 = vshll.u32 %v2105, 16
        %v2107 = vadd.s32 %v2106, %v2104
        %vm2108 = vcmp.lt.s32.totalorder %v1852, %v1853
        %v2109 = vsel %vm2108, %v1852, %v1853
        %vm2110 = vcmp.lt.s32.totalorder %v2109, %v1854
        %v2111 = vsel %vm2110, %v2109, %v1854
        %vm2112 = vcmp.lt.s32.totalorder %v2111, %v1855
        %v2113 = vsel %vm2112, %v2111, %v1855
        %v2114 = vand.u32 %v2113, 65535
        %v2115 = vshra.s32 %v2113, 16
        %v2116 = vcvt.s32.f32 %v2114
        %v2117 = vcvt.s32.f32 %v2115
        %2118 = vmin.xlane.f32.xlu0 %v2117
        %v2119 = vpop.xlane.xlu0 %2118
        %vm2120 = vcmp.eq.f32.partialorder %v2117, %v2119
        %v2121 = vsel %vm2120, %v2116, inf
        %2122 = vmin.xlane.f32.xlu0 %v2121
        %v2123 = vpop.xlane.xlu0 %2122
        %v2124 = vcvt.f32.s32 %v2123
        %v2125 = vcvt.f32.s32 %v2119
        %v2126 = vshll.u32 %v2125, 16
        %v2127 = vadd.s32 %v2126, %v2124
        %vm2128 = vcmp.lt.s32.totalorder %v1856, %v1857
        %v2129 = vsel %vm2128, %v1856, %v1857
        %vm2130 = vcmp.lt.s32.totalorder %v2129, %v1858
        %v2131 = vsel %vm2130, %v2129, %v1858
        %vm2132 = vcmp.lt.s32.totalorder %v2131, %v1859
        %v2133 = vsel %vm2132, %v2131, %v1859
        %v2134 = vand.u32 %v2133, 65535
        %v2135 = vshra.s32 %v2133, 16
        %v2136 = vcvt.s32.f32 %v2134
        %v2137 = vcvt.s32.f32 %v2135
        %2138 = vmin.xlane.f32.xlu0 %v2137
        %v2139 = vpop.xlane.xlu0 %2138
        %vm2140 = vcmp.eq.f32.partialorder %v2137, %v2139
        %v2141 = vsel %vm2140, %v2136, inf
        %2142 = vmin.xlane.f32.xlu0 %v2141
        %v2143 = vpop.xlane.xlu0 %2142
        %v2144 = vcvt.f32.s32 %v2143
        %v2145 = vcvt.f32.s32 %v2139
        %v2146 = vshll.u32 %v2145, 16
        %v2147 = vadd.s32 %v2146, %v2144
        %vm2148 = vcmp.lt.s32.totalorder %v1860, %v1861
        %v2149 = vsel %vm2148, %v1860, %v1861
        %vm2150 = vcmp.lt.s32.totalorder %v2149, %v1862
        %v2151 = vsel %vm2150, %v2149, %v1862
        %vm2152 = vcmp.lt.s32.totalorder %v2151, %v1863
        %v2153 = vsel %vm2152, %v2151, %v1863
        %v2154 = vand.u32 %v2153, 65535
        %v2155 = vshra.s32 %v2153, 16
        %v2156 = vcvt.s32.f32 %v2154
        %v2157 = vcvt.s32.f32 %v2155
        %2158 = vmin.xlane.f32.xlu0 %v2157
        %v2159 = vpop.xlane.xlu0 %2158
        %vm2160 = vcmp.eq.f32.partialorder %v2157, %v2159
        %v2161 = vsel %vm2160, %v2156, inf
        %2162 = vmin.xlane.f32.xlu0 %v2161
        %v2163 = vpop.xlane.xlu0 %2162
        %v2164 = vcvt.f32.s32 %v2163
        %v2165 = vcvt.f32.s32 %v2159
        %v2166 = vshll.u32 %v2165, 16
        %v2167 = vadd.s32 %v2166, %v2164
        %vm2168 = vcmp.lt.s32.totalorder %v1864, %v1865
        %v2169 = vsel %vm2168, %v1864, %v1865
        %vm2170 = vcmp.lt.s32.totalorder %v2169, %v1866
        %v2171 = vsel %vm2170, %v2169, %v1866
        %vm2172 = vcmp.lt.s32.totalorder %v2171, %v1867
        %v2173 = vsel %vm2172, %v2171, %v1867
        %v2174 = vand.u32 %v2173, 65535
        %v2175 = vshra.s32 %v2173, 16
        %v2176 = vcvt.s32.f32 %v2174
        %v2177 = vcvt.s32.f32 %v2175
        %2178 = vmin.xlane.f32.xlu0 %v2177
        %v2179 = vpop.xlane.xlu0 %2178
        %vm2180 = vcmp.eq.f32.partialorder %v2177, %v2179
        %v2181 = vsel %vm2180, %v2176, inf
        %2182 = vmin.xlane.f32.xlu0 %v2181
        %v2183 = vpop.xlane.xlu0 %2182
        %v2184 = vcvt.f32.s32 %v2183
        %v2185 = vcvt.f32.s32 %v2179
        %v2186 = vshll.u32 %v2185, 16
        %v2187 = vadd.s32 %v2186, %v2184
        %v2188 = vadd.s32 %v1887, 512
        %v2189 = vadd.s32 %v1907, 512
        %v2190 = vadd.s32 %v1927, 512
        %v2191 = vadd.s32 %v1947, 512
        %v2192 = vadd.s32 %v1967, 512
        %v2193 = vadd.s32 %v1987, 512
        %v2194 = vadd.s32 %v2007, 512
        %v2195 = vadd.s32 %v2027, 512
        %v2196 = vadd.s32 %v2047, 512
        %v2197 = vadd.s32 %v2067, 512
        %v2198 = vadd.s32 %v2087, 512
        %v2199 = vadd.s32 %v2107, 512
        %v2200 = vadd.s32 %v2127, 512
        %v2201 = vadd.s32 %v2147, 512
        %v2202 = vadd.s32 %v2167, 512
        %v2203 = vadd.s32 %v2187, 512
        %vm2204 = vcmp.gt.f32.partialorder %v1664, %v1232
        %vm2205 = vcmp.gt.f32.partialorder %v1669, %v1233
        %vm2206 = vcmp.gt.f32.partialorder %v1674, %v1234
        %vm2207 = vcmp.gt.f32.partialorder %v1679, %v1235
        %vm2208 = vcmp.gt.f32.partialorder %v1684, %v1236
        %vm2209 = vcmp.gt.f32.partialorder %v1689, %v1237
        %vm2210 = vcmp.gt.f32.partialorder %v1694, %v1238
        %vm2211 = vcmp.gt.f32.partialorder %v1699, %v1239
        %vm2212 = vcmp.gt.f32.partialorder %v1704, %v1240
        %vm2213 = vcmp.gt.f32.partialorder %v1709, %v1241
        %vm2214 = vcmp.gt.f32.partialorder %v1714, %v1242
        %vm2215 = vcmp.gt.f32.partialorder %v1719, %v1243
        %vm2216 = vcmp.gt.f32.partialorder %v1724, %v1244
        %vm2217 = vcmp.gt.f32.partialorder %v1729, %v1245
        %vm2218 = vcmp.gt.f32.partialorder %v1734, %v1246
        %vm2219 = vcmp.gt.f32.partialorder %v1739, %v1247
        %v2220 = vsel %vm2204, %v2188, %v1216
        %v2221 = vsel %vm2205, %v2189, %v1217
        %v2222 = vsel %vm2206, %v2190, %v1218
        %v2223 = vsel %vm2207, %v2191, %v1219
        %v2224 = vsel %vm2208, %v2192, %v1220
        %v2225 = vsel %vm2209, %v2193, %v1221
        %v2226 = vsel %vm2210, %v2194, %v1222
        %v2227 = vsel %vm2211, %v2195, %v1223
        %v2228 = vsel %vm2212, %v2196, %v1224
        %v2229 = vsel %vm2213, %v2197, %v1225
        %v2230 = vsel %vm2214, %v2198, %v1226
        %v2231 = vsel %vm2215, %v2199, %v1227
        %v2232 = vsel %vm2216, %v2200, %v1228
        %v2233 = vsel %vm2217, %v2201, %v1229
        %v2234 = vsel %vm2218, %v2202, %v1230
        %v2235 = vsel %vm2219, %v2203, %v1231
        %v2236 = vlaneseq
        %v2237 = vshrl.u32 %v2236, 7
        %v2238 = vsub.s32 %v748, %v2237
        %v2239 = vrot.slane %v2220, %v2238
        %v2240 = vadd.s32 %v748, 4294967288
        %v2241 = vlaneseq
        %v2242 = vshrl.u32 %v2241, 7
        %v2243 = vsub.s32 %v2240, %v2242
        %v2244 = vrot.slane %v2221, %v2243
        %vm2245 = vcmask 130112
        %v2246 = vsel %vm2245, %v2244, %v2239
        %v2247 = vadd.s32 %v748, 4294967280
        %v2248 = vlaneseq
        %v2249 = vshrl.u32 %v2248, 7
        %v2250 = vsub.s32 %v2247, %v2249
        %v2251 = vrot.slane %v2222, %v2250
        %vm2252 = vcmask 195712
        %v2253 = vsel %vm2252, %v2251, %v2246
        %v2254 = vadd.s32 %v748, 4294967272
        %v2255 = vlaneseq
        %v2256 = vshrl.u32 %v2255, 7
        %v2257 = vsub.s32 %v2254, %v2256
        %v2258 = vrot.slane %v2223, %v2257
        %vm2259 = vcmask 261312
        %v2260 = vsel %vm2259, %v2258, %v2253
        %v2261 = vadd.s32 %v748, 4294967264
        %v2262 = vlaneseq
        %v2263 = vshrl.u32 %v2262, 7
        %v2264 = vsub.s32 %v2261, %v2263
        %v2265 = vrot.slane %v2224, %v2264
        %vm2266 = vcmask 326912
        %v2267 = vsel %vm2266, %v2265, %v2260
        %v2268 = vadd.s32 %v748, 4294967256
        %v2269 = vlaneseq
        %v2270 = vshrl.u32 %v2269, 7
        %v2271 = vsub.s32 %v2268, %v2270
        %v2272 = vrot.slane %v2225, %v2271
        %vm2273 = vcmask 392512
        %v2274 = vsel %vm2273, %v2272, %v2267
        %v2275 = vadd.s32 %v748, 4294967248
        %v2276 = vlaneseq
        %v2277 = vshrl.u32 %v2276, 7
        %v2278 = vsub.s32 %v2275, %v2277
        %v2279 = vrot.slane %v2226, %v2278
        %vm2280 = vcmask 458112
        %v2281 = vsel %vm2280, %v2279, %v2274
        %v2282 = vadd.s32 %v748, 4294967240
        %v2283 = vlaneseq
        %v2284 = vshrl.u32 %v2283, 7
        %v2285 = vsub.s32 %v2282, %v2284
        %v2286 = vrot.slane %v2227, %v2285
        %vm2287 = vcmask 523712
        %v2288 = vsel %vm2287, %v2286, %v2281
        %v2289 = vadd.s32 %v748, 4294967232
        %v2290 = vlaneseq
        %v2291 = vshrl.u32 %v2290, 7
        %v2292 = vsub.s32 %v2289, %v2291
        %v2293 = vrot.slane %v2228, %v2292
        %vm2294 = vcmask 589312
        %v2295 = vsel %vm2294, %v2293, %v2288
        %v2296 = vadd.s32 %v748, 4294967224
        %v2297 = vlaneseq
        %v2298 = vshrl.u32 %v2297, 7
        %v2299 = vsub.s32 %v2296, %v2298
        %v2300 = vrot.slane %v2229, %v2299
        %vm2301 = vcmask 654912
        %v2302 = vsel %vm2301, %v2300, %v2295
        %v2303 = vadd.s32 %v748, 4294967216
        %v2304 = vlaneseq
        %v2305 = vshrl.u32 %v2304, 7
        %v2306 = vsub.s32 %v2303, %v2305
        %v2307 = vrot.slane %v2230, %v2306
        %vm2308 = vcmask 720512
        %v2309 = vsel %vm2308, %v2307, %v2302
        %v2310 = vadd.s32 %v748, 4294967208
        %v2311 = vlaneseq
        %v2312 = vshrl.u32 %v2311, 7
        %v2313 = vsub.s32 %v2310, %v2312
        %v2314 = vrot.slane %v2231, %v2313
        %vm2315 = vcmask 786112
        %v2316 = vsel %vm2315, %v2314, %v2309
        %v2317 = vadd.s32 %v748, 4294967200
        %v2318 = vlaneseq
        %v2319 = vshrl.u32 %v2318, 7
        %v2320 = vsub.s32 %v2317, %v2319
        %v2321 = vrot.slane %v2232, %v2320
        %vm2322 = vcmask 851712
        %v2323 = vsel %vm2322, %v2321, %v2316
        %v2324 = vadd.s32 %v748, 4294967192
        %v2325 = vlaneseq
        %v2326 = vshrl.u32 %v2325, 7
        %v2327 = vsub.s32 %v2324, %v2326
        %v2328 = vrot.slane %v2233, %v2327
        %vm2329 = vcmask 917312
        %v2330 = vsel %vm2329, %v2328, %v2323
        %v2331 = vadd.s32 %v748, 4294967184
        %v2332 = vlaneseq
        %v2333 = vshrl.u32 %v2332, 7
        %v2334 = vsub.s32 %v2331, %v2333
        %v2335 = vrot.slane %v2234, %v2334
        %vm2336 = vcmask 982912
        %v2337 = vsel %vm2336, %v2335, %v2330
        %v2338 = vadd.s32 %v748, 4294967176
        %v2339 = vlaneseq
        %v2340 = vshrl.u32 %v2339, 7
        %v2341 = vsub.s32 %v2338, %v2340
        %v2342 = vrot.slane %v2235, %v2341
        %vm2343 = vcmask 1048512
        %v2344 = vsel %vm2343, %v2342, %v2337
        %2345 = vst [vmem:[%s175] sm:$0x1] %v2344
        %s2346 = sand.u32 %s93, 1
        %s2347 = scalar_lea.sflag [#allocation3], %s2346
        %s2348 = sand.u32 %s93, 1
        %s2349 = scalar_lea.vmem [#allocation2], %s2348
        // Predicated region
        $region33: #{tpu_custom_call.1} parent=31 // pred_check
          %p2350 = pneg %p103
        $region34: #{tpu_custom_call.1} parent=31 // pred_check_branch
          %2352 = sbr.rel (%p2350) target = $region36
        $region35: #{tpu_custom_call.1} parent=31 // pred_region
          %s2354 = ssub.s32 16, 16
          %2355 = vsyncadd %s2347, %s2354
          %s2356 = smul.addr %s17, 16
          %s2357 = scalar_lea.hbm %s3, %s2356
          %s2359 = sshll.u32 %s2349, 4
          %s2360 = int_to_ptr.vmem [resolvable:$true] %s2359
          %2362 = dma.vmem_to_hbm [thread:$0]  %s2360, 16, %s2357, %s2347
        $region36: #{tpu_custom_call.1} parent=31 // pred_fallthru
          _
      $region32: #{tpu_custom_call.1} parent=5 // pred_fallthru
        _
      %p2363 = scmp.le.s32.totalorder 2, %s12
      // Predicated region
      $region37: #{tpu_custom_call.1} parent=5 // pred_check
        %p2364 = pneg %p2363
      $region38: #{tpu_custom_call.1} parent=5 // pred_check_branch
        %2366 = sbr.rel (%p2364) target = $region40
      $region39: #{tpu_custom_call.1} parent=5 // pred_region
        %s2367 = ssub.s32 %s12, 2
        // Predicated region
        $region41: #{tpu_custom_call.1} parent=39 // pred_check
          %p2368 = pneg %p109
        $region42: #{tpu_custom_call.1} parent=39 // pred_check_branch
          %2370 = sbr.rel (%p2368) target = $region44
        $region43: #{tpu_custom_call.1} parent=39 // pred_region
          %s2371 = sand.u32 %s94, 1
          %s2372 = scalar_lea.sflag [#allocation3], %s2371
          %s2373 = sand.u32 %s94, 1
          %s2374 = scalar_lea.vmem [#allocation2], %s2373
          %2375 = dma.done %s2372, 16
        $region44: #{tpu_custom_call.1} parent=39 // pred_fallthru
          _
      $region40: #{tpu_custom_call.1} parent=5 // pred_fallthru
        _
    $region6: #{tpu_custom_call.1} parent=1 // loop_footer
      %s16 = sadd.s32 1, %s12
    $region7: #{tpu_custom_call.1} parent=1 // loop_footer_branch
      %11 = sbr.rel target = $region3
    $region8: #{tpu_custom_call.1} parent=1 // loop_exit
      _
    %2376 = vsyncpa [#allocation3], 1
    %s2377 = scalar_lea.sflag [#allocation3], 1
    %2378 = vsyncpa %s2377, 1

</llo_original>
